<compile_context>
chip_gen: v7x
topology: tpu7x:2x2x1
jax: 0.10.0
libtpu: 0.0.40
codegen_flags: <defaults>
</compile_context>

<pallas_src>
import jax
import jax.numpy as jnp
from jax.experimental import pallas as pl
from jax.experimental.pallas import tpu as pltpu


def _sigmoid(x):
    # sigmoid(x) == 0.5 * (tanh(x/2) + 1): one EUP tanh, no VALU divide chain.
    return 0.5 * (jnp.tanh(0.5 * x) + 1.0)


def _round_up(x, m):
    return (x + m - 1) // m * m


# ----------------------------------------------------------------------------
# Fused decoder kernel: embedding gather + x-projection + LSTM + Linear
# ----------------------------------------------------------------------------
def _fused_decoder_kernel(ids_ref, feat_ref, table_ref, w_ih_ref, w_hh_ref,
                          b_gate_ref, w_out_ref, b_out_ref, out_ref):
    """All operands are whole-array VMEM blocks.

    ids_ref   : ((T-1)*Bp, 1) int32  caption tokens, time-major, batch padded to Bp
    feat_ref  : (Bp, E)              image features (the t = 0 input), batch padded
    table_ref : (V, E)               embedding table
    w_ih_ref  : (E, 4H)              LSTM input weights  (transposed)
    w_hh_ref  : (H, 4H)              LSTM hidden weights (transposed)
    b_gate_ref: (1, 4H)              b_ih + b_hh (folded)
    w_out_ref : (H, V)               Linear weight (transposed)
    b_out_ref : (1, V)               Linear bias
    out_ref   : (B, T, V)            logits, batch_first (only the real B rows)
    """
    B, T, V = out_ref.shape
    Bp = feat_ref.shape[0]
    H = w_hh_ref.shape[0]
    n = ids_ref.shape[0]                                   # (T - 1) * Bp

    # ---- Embedding: single one-hot MXU matmul over every caption token ----------
    onehot = (jax.lax.broadcasted_iota(jnp.int32, (n, V), 1)
              == ids_ref[...]).astype(jnp.float32)                       # (n, V)
    emb = jnp.dot(onehot, table_ref[...],
                  preferred_element_type=jnp.float32)                    # (n, E)

    # ---- Time-major input slab: rows [0, Bp) = image feature, then embeddings ---
    x_flat = jnp.concatenate([feat_ref[...], emb], axis=0)               # (T*Bp, E)

    # ---- Batched input projection for all timesteps (both LSTM biases folded) ---
    xproj = jnp.dot(x_flat, w_ih_ref[...],
                    preferred_element_type=jnp.float32) + b_gate_ref[...]  # (T*Bp, 4H)

    # ---- Recurrence: statically unrolled, h/c carried in registers --------------
    w_hh = w_hh_ref[...]                                   # stays VMEM/vreg resident
    h = jnp.zeros((Bp, H), jnp.float32)
    c = jnp.zeros((Bp, H), jnp.float32)
    hs = []
    for t in range(T):                                     # Bp % 8 == 0 -> aligned slices
        gates = xproj[t * Bp:(t + 1) * Bp, :] + jnp.dot(
            h, w_hh, preferred_element_type=jnp.float32)                 # (Bp, 4H)
        i_g = _sigmoid(gates[:, 0 * H:1 * H])
        f_g = _sigmoid(gates[:, 1 * H:2 * H])
        g_g = jnp.tanh(gates[:, 2 * H:3 * H])
        o_g = _sigmoid(gates[:, 3 * H:4 * H])
        c = f_g * c + i_g * g_g
        h = o_g * jnp.tanh(c)
        hs.append(h)

    # ---- Output Linear, written straight in (B, T, V) order ---------------------
    # Per real batch row: gather its T hidden states into a dense (T, H) slab,
    # one MXU matmul, one dense lane/sublane-aligned (T, V) store.
    w_out = w_out_ref[...]
    b_out = b_out_ref[...]
    for b in range(B):
        h_b = jnp.concatenate([ht[b:b + 1, :] for ht in hs], axis=0)     # (T, H)
        out_ref[b] = (jnp.dot(h_b, w_out, preferred_element_type=jnp.float32)
                      + b_out).astype(out_ref.dtype)                     # (T, V)


# ----------------------------------------------------------------------------
# Forward wrapper (mirrors DecoderRNN.forward)
# ----------------------------------------------------------------------------
def decoder_forward(features, captions, params):
    """features: (B, E) f32; captions: (B, L) int32 -> logits (B, L, vocab)."""
    B, L = captions.shape
    H = params["w_hh_t"].shape[0]
    V = params["w_out_t"].shape[1]
    T = L                                  # 1 image-feature step + (L-1) caption tokens
    assert L >= 2, "need at least one caption token"  # TODO(synk): degenerate L == 1 path

    # Pad the batch up to a sublane multiple so every in-kernel slice / store is
    # (8, 128)-tile aligned; padded rows compute throwaway values, never stored.
    Bp = _round_up(B, 8)
    feat_p = jnp.pad(features.astype(jnp.float32), ((0, Bp - B), (0, 0)))     # (Bp, E)
    ids_tm = jnp.transpose(captions[:, :-1].astype(jnp.int32))                # (L-1, B)
    ids_p = jnp.pad(ids_tm, ((0, 0), (0, Bp - B))).reshape((L - 1) * Bp, 1)   # time-major

    b_gate = (params["b_ih"] + params["b_hh"]).reshape(1, 4 * H)
    b_out = params["b_out"].reshape(1, V)

    vmem = pl.BlockSpec(memory_space=pltpu.MemorySpace.VMEM)
    return pl.pallas_call(
        _fused_decoder_kernel,
        out_shape=jax.ShapeDtypeStruct((B, T, V), jnp.float32),
        in_specs=[vmem] * 8,
        out_specs=vmem,
    )(ids_p, feat_p, params["emb"], params["w_ih_t"], params["w_hh_t"],
      b_gate, params["w_out_t"], b_out)


# ----------------------------------------------------------------------------
# Parameters (deterministic synthetic init, PyTorch-style)
# ----------------------------------------------------------------------------
def init_decoder_params(key, embed_size, hidden_size, vocab_size):
    E, H, V = embed_size, hidden_size, vocab_size
    ks = jax.random.split(key, 7)
    bound = 1.0 / (H ** 0.5)
    return {
        "emb": jax.random.normal(ks[0], (V, E), jnp.float32),    # nn.Embedding ~ N(0,1)
        "w_ih_t": jax.random.uniform(ks[1], (E, 4 * H), jnp.float32, -bound, bound),
        "w_hh_t": jax.random.uniform(ks[2], (H, 4 * H), jnp.float32, -bound, bound),
        "b_ih": jax.random.uniform(ks[3], (4 * H,), jnp.float32, -bound, bound),
        "b_hh": jax.random.uniform(ks[4], (4 * H,), jnp.float32, -bound, bound),
        "w_out_t": jax.random.uniform(ks[5], (H, V), jnp.float32, -bound, bound),
        "b_out": jax.random.uniform(ks[6], (V,), jnp.float32, -bound, bound),
    }


# ----------------------------------------------------------------------------
# Pure-JAX reference for self-verification
# ----------------------------------------------------------------------------
def decoder_forward_ref(features, captions, params):
    H = params["w_hh_t"].shape[0]
    emb = jnp.take(params["emb"], captions[:, :-1], axis=0)          # (B, L-1, E)
    x = jnp.concatenate([features[:, None, :], emb], axis=1)         # (B, T, E)
    B = x.shape[0]
    bias = params["b_ih"] + params["b_hh"]

    def step(carry, x_t):
        h, c = carry
        gates = x_t @ params["w_ih_t"] + bias + h @ params["w_hh_t"]
        i_g = _sigmoid(gates[:, 0 * H:1 * H])
        f_g = _sigmoid(gates[:, 1 * H:2 * H])
        g_g = jnp.tanh(gates[:, 2 * H:3 * H])
        o_g = _sigmoid(gates[:, 3 * H:4 * H])
        c = f_g * c + i_g * g_g
        h = o_g * jnp.tanh(c)
        return (h, c), h

    init = (jnp.zeros((B, H), jnp.float32), jnp.zeros((B, H), jnp.float32))
    _, h_seq = jax.lax.scan(step, init, jnp.transpose(x, (1, 0, 2)))  # (T, B, H)
    logits = h_seq @ params["w_out_t"] + params["b_out"]              # (T, B, V)
    return jnp.transpose(logits, (1, 0, 2))                          # (B, T, V)


if __name__ == "__main__":
    key = jax.random.PRNGKey(0)
    kp, kf, kc = jax.random.split(key, 3)

    B, L = 2, 8              # batch, caption length (output seq length T = L)
    E, H, V = 64, 128, 256   # embed_size, hidden_size, vocab_size

    params = init_decoder_params(kp, E, H, V)
    features = jax.random.normal(kf, (B, E), jnp.float32)
    captions = jax.random.randint(kc, (B, L), 0, V, dtype=jnp.int32)

    fwd = jax.jit(decoder_forward)
    out = jax.block_until_ready(fwd(features, captions, params))

    assert out.shape == (B, L, V), out.shape
    assert out.dtype == jnp.float32
    assert bool(jnp.all(jnp.isfinite(out)))

    with jax.default_matmul_precision("highest"):
        ref = decoder_forward_ref(features, captions, params)
    max_err = float(jnp.max(jnp.abs(out - ref)))
    assert bool(jnp.allclose(out, ref, rtol=1e-3, atol=1e-3)), max_err

    print("KERNEL_OK")
</pallas_src>

<mosaic_0001>
module attributes {stable_mosaic.version = 11 : i64} {
  func.func @_fused_decoder_kernel(%arg0: memref<56x1xi32, #tpu.memory_space<vmem>>, %arg1: memref<8x64xf32, #tpu.memory_space<vmem>>, %arg2: memref<256x64xf32, #tpu.memory_space<vmem>>, %arg3: memref<64x512xf32, #tpu.memory_space<vmem>>, %arg4: memref<128x512xf32, #tpu.memory_space<vmem>>, %arg5: memref<1x512xf32, #tpu.memory_space<vmem>>, %arg6: memref<128x256xf32, #tpu.memory_space<vmem>>, %arg7: memref<1x256xf32, #tpu.memory_space<vmem>>, %arg8: memref<2x8x256xf32, #tpu.memory_space<vmem>>) attributes {dimension_semantics = [], scalar_prefetch = 0 : i64, scratch_operands = 0 : i64, tpu.core_type = #tpu.core_type<tc>} {
    %0 = tpu.iota {dimensions = array<i32: 1>} : vector<56x256xi32>
    %c0 = arith.constant 0 : index
    %c0_0 = arith.constant 0 : index
    %1 = vector.load %arg0[%c0, %c0_0] : memref<56x1xi32, #tpu.memory_space<vmem>>, vector<56x1xi32>
    %2 = vector.broadcast %1 : vector<56x1xi32> to vector<56x256xi32>
    %3 = arith.cmpi eq, %0, %2 : vector<56x256xi32>
    %4 = arith.extui %3 : vector<56x256xi1> to vector<56x256xi32>
    %5 = arith.sitofp %4 : vector<56x256xi32> to vector<56x256xf32>
    %c0_1 = arith.constant 0 : index
    %c0_2 = arith.constant 0 : index
    %6 = vector.load %arg2[%c0_1, %c0_2] : memref<256x64xf32, #tpu.memory_space<vmem>>, vector<256x64xf32>
    %cst = arith.constant dense<0.000000e+00> : vector<56x64xf32>
    %7 = tpu.matmul %5, %6, %cst {dimension_numbers = #tpu.dot_dimension_numbers<[1], [0], [0], [1], [0, 0, 1, 1], [], []>} : vector<56x256xf32>, vector<256x64xf32>, vector<56x64xf32> -> vector<56x64xf32>
    %c0_3 = arith.constant 0 : index
    %c0_4 = arith.constant 0 : index
    %8 = vector.load %arg1[%c0_3, %c0_4] : memref<8x64xf32, #tpu.memory_space<vmem>>, vector<8x64xf32>
    %9 = tpu.concatenate %8, %7 in 0 : vector<8x64xf32>, vector<56x64xf32> -> vector<64x64xf32>
    %c0_5 = arith.constant 0 : index
    %c0_6 = arith.constant 0 : index
    %10 = vector.load %arg3[%c0_5, %c0_6] : memref<64x512xf32, #tpu.memory_space<vmem>>, vector<64x512xf32>
    %cst_7 = arith.constant dense<0.000000e+00> : vector<64x512xf32>
    %11 = tpu.matmul %9, %10, %cst_7 {dimension_numbers = #tpu.dot_dimension_numbers<[1], [0], [0], [1], [0, 0, 1, 1], [], []>} : vector<64x64xf32>, vector<64x512xf32>, vector<64x512xf32> -> vector<64x512xf32>
    %c0_8 = arith.constant 0 : index
    %c0_9 = arith.constant 0 : index
    %12 = vector.load %arg5[%c0_8, %c0_9] : memref<1x512xf32, #tpu.memory_space<vmem>>, vector<1x512xf32>
    %13 = vector.broadcast %12 : vector<1x512xf32> to vector<64x512xf32>
    %14 = arith.addf %11, %13 : vector<64x512xf32>
    %c0_10 = arith.constant 0 : index
    %c0_11 = arith.constant 0 : index
    %15 = vector.load %arg4[%c0_10, %c0_11] : memref<128x512xf32, #tpu.memory_space<vmem>>, vector<128x512xf32>
    %cst_12 = arith.constant 0.000000e+00 : f32
    %16 = vector.broadcast %cst_12 : f32 to vector<8x128xf32>
    %cst_13 = arith.constant 0.000000e+00 : f32
    %17 = vector.broadcast %cst_13 : f32 to vector<8x128xf32>
    %18 = vector.extract_strided_slice %14 {offsets = [0, 0], sizes = [8, 512], strides = [1, 1]} : vector<64x512xf32> to vector<8x512xf32>
    %cst_14 = arith.constant dense<0.000000e+00> : vector<8x512xf32>
    %19 = tpu.matmul %16, %15, %cst_14 {dimension_numbers = #tpu.dot_dimension_numbers<[1], [0], [0], [1], [0, 0, 1, 1], [], []>} : vector<8x128xf32>, vector<128x512xf32>, vector<8x512xf32> -> vector<8x512xf32>
    %20 = arith.addf %18, %19 : vector<8x512xf32>
    %21 = vector.extract_strided_slice %20 {offsets = [0, 0], sizes = [8, 128], strides = [1, 1]} : vector<8x512xf32> to vector<8x128xf32>
    %cst_15 = arith.constant 5.000000e-01 : f32
    %22 = vector.broadcast %cst_15 : f32 to vector<8x128xf32>
    %23 = arith.mulf %22, %21 : vector<8x128xf32>
    %24 = math.tanh %23 : vector<8x128xf32>
    %cst_16 = arith.constant 1.000000e+00 : f32
    %25 = vector.broadcast %cst_16 : f32 to vector<8x128xf32>
    %26 = arith.addf %24, %25 : vector<8x128xf32>
    %cst_17 = arith.constant 5.000000e-01 : f32
    %27 = vector.broadcast %cst_17 : f32 to vector<8x128xf32>
    %28 = arith.mulf %27, %26 : vector<8x128xf32>
    %29 = vector.extract_strided_slice %20 {offsets = [0, 128], sizes = [8, 128], strides = [1, 1]} : vector<8x512xf32> to vector<8x128xf32>
    %cst_18 = arith.constant 5.000000e-01 : f32
    %30 = vector.broadcast %cst_18 : f32 to vector<8x128xf32>
    %31 = arith.mulf %30, %29 : vector<8x128xf32>
    %32 = math.tanh %31 : vector<8x128xf32>
    %cst_19 = arith.constant 1.000000e+00 : f32
    %33 = vector.broadcast %cst_19 : f32 to vector<8x128xf32>
    %34 = arith.addf %32, %33 : vector<8x128xf32>
    %cst_20 = arith.constant 5.000000e-01 : f32
    %35 = vector.broadcast %cst_20 : f32 to vector<8x128xf32>
    %36 = arith.mulf %35, %34 : vector<8x128xf32>
    %37 = vector.extract_strided_slice %20 {offsets = [0, 256], sizes = [8, 128], strides = [1, 1]} : vector<8x512xf32> to vector<8x128xf32>
    %38 = math.tanh %37 : vector<8x128xf32>
    %39 = vector.extract_strided_slice %20 {offsets = [0, 384], sizes = [8, 128], strides = [1, 1]} : vector<8x512xf32> to vector<8x128xf32>
    %cst_21 = arith.constant 5.000000e-01 : f32
    %40 = vector.broadcast %cst_21 : f32 to vector<8x128xf32>
    %41 = arith.mulf %40, %39 : vector<8x128xf32>
    %42 = math.tanh %41 : vector<8x128xf32>
    %cst_22 = arith.constant 1.000000e+00 : f32
    %43 = vector.broadcast %cst_22 : f32 to vector<8x128xf32>
    %44 = arith.addf %42, %43 : vector<8x128xf32>
    %cst_23 = arith.constant 5.000000e-01 : f32
    %45 = vector.broadcast %cst_23 : f32 to vector<8x128xf32>
    %46 = arith.mulf %45, %44 : vector<8x128xf32>
    %47 = arith.mulf %36, %17 : vector<8x128xf32>
    %48 = arith.mulf %28, %38 : vector<8x128xf32>
    %49 = arith.addf %47, %48 : vector<8x128xf32>
    %50 = math.tanh %49 : vector<8x128xf32>
    %51 = arith.mulf %46, %50 : vector<8x128xf32>
    %52 = vector.extract_strided_slice %14 {offsets = [8, 0], sizes = [8, 512], strides = [1, 1]} : vector<64x512xf32> to vector<8x512xf32>
    %cst_24 = arith.constant dense<0.000000e+00> : vector<8x512xf32>
    %53 = tpu.matmul %51, %15, %cst_24 {dimension_numbers = #tpu.dot_dimension_numbers<[1], [0], [0], [1], [0, 0, 1, 1], [], []>} : vector<8x128xf32>, vector<128x512xf32>, vector<8x512xf32> -> vector<8x512xf32>
    %54 = arith.addf %52, %53 : vector<8x512xf32>
    %55 = vector.extract_strided_slice %54 {offsets = [0, 0], sizes = [8, 128], strides = [1, 1]} : vector<8x512xf32> to vector<8x128xf32>
    %cst_25 = arith.constant 5.000000e-01 : f32
    %56 = vector.broadcast %cst_25 : f32 to vector<8x128xf32>
    %57 = arith.mulf %56, %55 : vector<8x128xf32>
    %58 = math.tanh %57 : vector<8x128xf32>
    %cst_26 = arith.constant 1.000000e+00 : f32
    %59 = vector.broadcast %cst_26 : f32 to vector<8x128xf32>
    %60 = arith.addf %58, %59 : vector<8x128xf32>
    %cst_27 = arith.constant 5.000000e-01 : f32
    %61 = vector.broadcast %cst_27 : f32 to vector<8x128xf32>
    %62 = arith.mulf %61, %60 : vector<8x128xf32>
    %63 = vector.extract_strided_slice %54 {offsets = [0, 128], sizes = [8, 128], strides = [1, 1]} : vector<8x512xf32> to vector<8x128xf32>
    %cst_28 = arith.constant 5.000000e-01 : f32
    %64 = vector.broadcast %cst_28 : f32 to vector<8x128xf32>
    %65 = arith.mulf %64, %63 : vector<8x128xf32>
    %66 = math.tanh %65 : vector<8x128xf32>
    %cst_29 = arith.constant 1.000000e+00 : f32
    %67 = vector.broadcast %cst_29 : f32 to vector<8x128xf32>
    %68 = arith.addf %66, %67 : vector<8x128xf32>
    %cst_30 = arith.constant 5.000000e-01 : f32
    %69 = vector.broadcast %cst_30 : f32 to vector<8x128xf32>
    %70 = arith.mulf %69, %68 : vector<8x128xf32>
    %71 = vector.extract_strided_slice %54 {offsets = [0, 256], sizes = [8, 128], strides = [1, 1]} : vector<8x512xf32> to vector<8x128xf32>
    %72 = math.tanh %71 : vector<8x128xf32>
    %73 = vector.extract_strided_slice %54 {offsets = [0, 384], sizes = [8, 128], strides = [1, 1]} : vector<8x512xf32> to vector<8x128xf32>
    %cst_31 = arith.constant 5.000000e-01 : f32
    %74 = vector.broadcast %cst_31 : f32 to vector<8x128xf32>
    %75 = arith.mulf %74, %73 : vector<8x128xf32>
    %76 = math.tanh %75 : vector<8x128xf32>
    %cst_32 = arith.constant 1.000000e+00 : f32
    %77 = vector.broadcast %cst_32 : f32 to vector<8x128xf32>
    %78 = arith.addf %76, %77 : vector<8x128xf32>
    %cst_33 = arith.constant 5.000000e-01 : f32
    %79 = vector.broadcast %cst_33 : f32 to vector<8x128xf32>
    %80 = arith.mulf %79, %78 : vector<8x128xf32>
    %81 = arith.mulf %70, %49 : vector<8x128xf32>
    %82 = arith.mulf %62, %72 : vector<8x128xf32>
    %83 = arith.addf %81, %82 : vector<8x128xf32>
    %84 = math.tanh %83 : vector<8x128xf32>
    %85 = arith.mulf %80, %84 : vector<8x128xf32>
    %86 = vector.extract_strided_slice %14 {offsets = [16, 0], sizes = [8, 512], strides = [1, 1]} : vector<64x512xf32> to vector<8x512xf32>
    %cst_34 = arith.constant dense<0.000000e+00> : vector<8x512xf32>
    %87 = tpu.matmul %85, %15, %cst_34 {dimension_numbers = #tpu.dot_dimension_numbers<[1], [0], [0], [1], [0, 0, 1, 1], [], []>} : vector<8x128xf32>, vector<128x512xf32>, vector<8x512xf32> -> vector<8x512xf32>
    %88 = arith.addf %86, %87 : vector<8x512xf32>
    %89 = vector.extract_strided_slice %88 {offsets = [0, 0], sizes = [8, 128], strides = [1, 1]} : vector<8x512xf32> to vector<8x128xf32>
    %cst_35 = arith.constant 5.000000e-01 : f32
    %90 = vector.broadcast %cst_35 : f32 to vector<8x128xf32>
    %91 = arith.mulf %90, %89 : vector<8x128xf32>
    %92 = math.tanh %91 : vector<8x128xf32>
    %cst_36 = arith.constant 1.000000e+00 : f32
    %93 = vector.broadcast %cst_36 : f32 to vector<8x128xf32>
    %94 = arith.addf %92, %93 : vector<8x128xf32>
    %cst_37 = arith.constant 5.000000e-01 : f32
    %95 = vector.broadcast %cst_37 : f32 to vector<8x128xf32>
    %96 = arith.mulf %95, %94 : vector<8x128xf32>
    %97 = vector.extract_strided_slice %88 {offsets = [0, 128], sizes = [8, 128], strides = [1, 1]} : vector<8x512xf32> to vector<8x128xf32>
    %cst_38 = arith.constant 5.000000e-01 : f32
    %98 = vector.broadcast %cst_38 : f32 to vector<8x128xf32>
    %99 = arith.mulf %98, %97 : vector<8x128xf32>
    %100 = math.tanh %99 : vector<8x128xf32>
    %cst_39 = arith.constant 1.000000e+00 : f32
    %101 = vector.broadcast %cst_39 : f32 to vector<8x128xf32>
    %102 = arith.addf %100, %101 : vector<8x128xf32>
    %cst_40 = arith.constant 5.000000e-01 : f32
    %103 = vector.broadcast %cst_40 : f32 to vector<8x128xf32>
    %104 = arith.mulf %103, %102 : vector<8x128xf32>
    %105 = vector.extract_strided_slice %88 {offsets = [0, 256], sizes = [8, 128], strides = [1, 1]} : vector<8x512xf32> to vector<8x128xf32>
    %106 = math.tanh %105 : vector<8x128xf32>
    %107 = vector.extract_strided_slice %88 {offsets = [0, 384], sizes = [8, 128], strides = [1, 1]} : vector<8x512xf32> to vector<8x128xf32>
    %cst_41 = arith.constant 5.000000e-01 : f32
    %108 = vector.broadcast %cst_41 : f32 to vector<8x128xf32>
    %109 = arith.mulf %108, %107 : vector<8x128xf32>
    %110 = math.tanh %109 : vector<8x128xf32>
    %cst_42 = arith.constant 1.000000e+00 : f32
    %111 = vector.broadcast %cst_42 : f32 to vector<8x128xf32>
    %112 = arith.addf %110, %111 : vector<8x128xf32>
    %cst_43 = arith.constant 5.000000e-01 : f32
    %113 = vector.broadcast %cst_43 : f32 to vector<8x128xf32>
    %114 = arith.mulf %113, %112 : vector<8x128xf32>
    %115 = arith.mulf %104, %83 : vector<8x128xf32>
    %116 = arith.mulf %96, %106 : vector<8x128xf32>
    %117 = arith.addf %115, %116 : vector<8x128xf32>
    %118 = math.tanh %117 : vector<8x128xf32>
    %119 = arith.mulf %114, %118 : vector<8x128xf32>
    %120 = vector.extract_strided_slice %14 {offsets = [24, 0], sizes = [8, 512], strides = [1, 1]} : vector<64x512xf32> to vector<8x512xf32>
    %cst_44 = arith.constant dense<0.000000e+00> : vector<8x512xf32>
    %121 = tpu.matmul %119, %15, %cst_44 {dimension_numbers = #tpu.dot_dimension_numbers<[1], [0], [0], [1], [0, 0, 1, 1], [], []>} : vector<8x128xf32>, vector<128x512xf32>, vector<8x512xf32> -> vector<8x512xf32>
    %122 = arith.addf %120, %121 : vector<8x512xf32>
    %123 = vector.extract_strided_slice %122 {offsets = [0, 0], sizes = [8, 128], strides = [1, 1]} : vector<8x512xf32> to vector<8x128xf32>
    %cst_45 = arith.constant 5.000000e-01 : f32
    %124 = vector.broadcast %cst_45 : f32 to vector<8x128xf32>
    %125 = arith.mulf %124, %123 : vector<8x128xf32>
    %126 = math.tanh %125 : vector<8x128xf32>
    %cst_46 = arith.constant 1.000000e+00 : f32
    %127 = vector.broadcast %cst_46 : f32 to vector<8x128xf32>
    %128 = arith.addf %126, %127 : vector<8x128xf32>
    %cst_47 = arith.constant 5.000000e-01 : f32
    %129 = vector.broadcast %cst_47 : f32 to vector<8x128xf32>
    %130 = arith.mulf %129, %128 : vector<8x128xf32>
    %131 = vector.extract_strided_slice %122 {offsets = [0, 128], sizes = [8, 128], strides = [1, 1]} : vector<8x512xf32> to vector<8x128xf32>
    %cst_48 = arith.constant 5.000000e-01 : f32
    %132 = vector.broadcast %cst_48 : f32 to vector<8x128xf32>
    %133 = arith.mulf %132, %131 : vector<8x128xf32>
    %134 = math.tanh %133 : vector<8x128xf32>
    %cst_49 = arith.constant 1.000000e+00 : f32
    %135 = vector.broadcast %cst_49 : f32 to vector<8x128xf32>
    %136 = arith.addf %134, %135 : vector<8x128xf32>
    %cst_50 = arith.constant 5.000000e-01 : f32
    %137 = vector.broadcast %cst_50 : f32 to vector<8x128xf32>
    %138 = arith.mulf %137, %136 : vector<8x128xf32>
    %139 = vector.extract_strided_slice %122 {offsets = [0, 256], sizes = [8, 128], strides = [1, 1]} : vector<8x512xf32> to vector<8x128xf32>
    %140 = math.tanh %139 : vector<8x128xf32>
    %141 = vector.extract_strided_slice %122 {offsets = [0, 384], sizes = [8, 128], strides = [1, 1]} : vector<8x512xf32> to vector<8x128xf32>
    %cst_51 = arith.constant 5.000000e-01 : f32
    %142 = vector.broadcast %cst_51 : f32 to vector<8x128xf32>
    %143 = arith.mulf %142, %141 : vector<8x128xf32>
    %144 = math.tanh %143 : vector<8x128xf32>
    %cst_52 = arith.constant 1.000000e+00 : f32
    %145 = vector.broadcast %cst_52 : f32 to vector<8x128xf32>
    %146 = arith.addf %144, %145 : vector<8x128xf32>
    %cst_53 = arith.constant 5.000000e-01 : f32
    %147 = vector.broadcast %cst_53 : f32 to vector<8x128xf32>
    %148 = arith.mulf %147, %146 : vector<8x128xf32>
    %149 = arith.mulf %138, %117 : vector<8x128xf32>
    %150 = arith.mulf %130, %140 : vector<8x128xf32>
    %151 = arith.addf %149, %150 : vector<8x128xf32>
    %152 = math.tanh %151 : vector<8x128xf32>
    %153 = arith.mulf %148, %152 : vector<8x128xf32>
    %154 = vector.extract_strided_slice %14 {offsets = [32, 0], sizes = [8, 512], strides = [1, 1]} : vector<64x512xf32> to vector<8x512xf32>
    %cst_54 = arith.constant dense<0.000000e+00> : vector<8x512xf32>
    %155 = tpu.matmul %153, %15, %cst_54 {dimension_numbers = #tpu.dot_dimension_numbers<[1], [0], [0], [1], [0, 0, 1, 1], [], []>} : vector<8x128xf32>, vector<128x512xf32>, vector<8x512xf32> -> vector<8x512xf32>
    %156 = arith.addf %154, %155 : vector<8x512xf32>
    %157 = vector.extract_strided_slice %156 {offsets = [0, 0], sizes = [8, 128], strides = [1, 1]} : vector<8x512xf32> to vector<8x128xf32>
    %cst_55 = arith.constant 5.000000e-01 : f32
    %158 = vector.broadcast %cst_55 : f32 to vector<8x128xf32>
    %159 = arith.mulf %158, %157 : vector<8x128xf32>
    %160 = math.tanh %159 : vector<8x128xf32>
    %cst_56 = arith.constant 1.000000e+00 : f32
    %161 = vector.broadcast %cst_56 : f32 to vector<8x128xf32>
    %162 = arith.addf %160, %161 : vector<8x128xf32>
    %cst_57 = arith.constant 5.000000e-01 : f32
    %163 = vector.broadcast %cst_57 : f32 to vector<8x128xf32>
    %164 = arith.mulf %163, %162 : vector<8x128xf32>
    %165 = vector.extract_strided_slice %156 {offsets = [0, 128], sizes = [8, 128], strides = [1, 1]} : vector<8x512xf32> to vector<8x128xf32>
    %cst_58 = arith.constant 5.000000e-01 : f32
    %166 = vector.broadcast %cst_58 : f32 to vector<8x128xf32>
    %167 = arith.mulf %166, %165 : vector<8x128xf32>
    %168 = math.tanh %167 : vector<8x128xf32>
    %cst_59 = arith.constant 1.000000e+00 : f32
    %169 = vector.broadcast %cst_59 : f32 to vector<8x128xf32>
    %170 = arith.addf %168, %169 : vector<8x128xf32>
    %cst_60 = arith.constant 5.000000e-01 : f32
    %171 = vector.broadcast %cst_60 : f32 to vector<8x128xf32>
    %172 = arith.mulf %171, %170 : vector<8x128xf32>
    %173 = vector.extract_strided_slice %156 {offsets = [0, 256], sizes = [8, 128], strides = [1, 1]} : vector<8x512xf32> to vector<8x128xf32>
    %174 = math.tanh %173 : vector<8x128xf32>
    %175 = vector.extract_strided_slice %156 {offsets = [0, 384], sizes = [8, 128], strides = [1, 1]} : vector<8x512xf32> to vector<8x128xf32>
    %cst_61 = arith.constant 5.000000e-01 : f32
    %176 = vector.broadcast %cst_61 : f32 to vector<8x128xf32>
    %177 = arith.mulf %176, %175 : vector<8x128xf32>
    %178 = math.tanh %177 : vector<8x128xf32>
    %cst_62 = arith.constant 1.000000e+00 : f32
    %179 = vector.broadcast %cst_62 : f32 to vector<8x128xf32>
    %180 = arith.addf %178, %179 : vector<8x128xf32>
    %cst_63 = arith.constant 5.000000e-01 : f32
    %181 = vector.broadcast %cst_63 : f32 to vector<8x128xf32>
    %182 = arith.mulf %181, %180 : vector<8x128xf32>
    %183 = arith.mulf %172, %151 : vector<8x128xf32>
    %184 = arith.mulf %164, %174 : vector<8x128xf32>
    %185 = arith.addf %183, %184 : vector<8x128xf32>
    %186 = math.tanh %185 : vector<8x128xf32>
    %187 = arith.mulf %182, %186 : vector<8x128xf32>
    %188 = vector.extract_strided_slice %14 {offsets = [40, 0], sizes = [8, 512], strides = [1, 1]} : vector<64x512xf32> to vector<8x512xf32>
    %cst_64 = arith.constant dense<0.000000e+00> : vector<8x512xf32>
    %189 = tpu.matmul %187, %15, %cst_64 {dimension_numbers = #tpu.dot_dimension_numbers<[1], [0], [0], [1], [0, 0, 1, 1], [], []>} : vector<8x128xf32>, vector<128x512xf32>, vector<8x512xf32> -> vector<8x512xf32>
    %190 = arith.addf %188, %189 : vector<8x512xf32>
    %191 = vector.extract_strided_slice %190 {offsets = [0, 0], sizes = [8, 128], strides = [1, 1]} : vector<8x512xf32> to vector<8x128xf32>
    %cst_65 = arith.constant 5.000000e-01 : f32
    %192 = vector.broadcast %cst_65 : f32 to vector<8x128xf32>
    %193 = arith.mulf %192, %191 : vector<8x128xf32>
    %194 = math.tanh %193 : vector<8x128xf32>
    %cst_66 = arith.constant 1.000000e+00 : f32
    %195 = vector.broadcast %cst_66 : f32 to vector<8x128xf32>
    %196 = arith.addf %194, %195 : vector<8x128xf32>
    %cst_67 = arith.constant 5.000000e-01 : f32
    %197 = vector.broadcast %cst_67 : f32 to vector<8x128xf32>
    %198 = arith.mulf %197, %196 : vector<8x128xf32>
    %199 = vector.extract_strided_slice %190 {offsets = [0, 128], sizes = [8, 128], strides = [1, 1]} : vector<8x512xf32> to vector<8x128xf32>
    %cst_68 = arith.constant 5.000000e-01 : f32
    %200 = vector.broadcast %cst_68 : f32 to vector<8x128xf32>
    %201 = arith.mulf %200, %199 : vector<8x128xf32>
    %202 = math.tanh %201 : vector<8x128xf32>
    %cst_69 = arith.constant 1.000000e+00 : f32
    %203 = vector.broadcast %cst_69 : f32 to vector<8x128xf32>
    %204 = arith.addf %202, %203 : vector<8x128xf32>
    %cst_70 = arith.constant 5.000000e-01 : f32
    %205 = vector.broadcast %cst_70 : f32 to vector<8x128xf32>
    %206 = arith.mulf %205, %204 : vector<8x128xf32>
    %207 = vector.extract_strided_slice %190 {offsets = [0, 256], sizes = [8, 128], strides = [1, 1]} : vector<8x512xf32> to vector<8x128xf32>
    %208 = math.tanh %207 : vector<8x128xf32>
    %209 = vector.extract_strided_slice %190 {offsets = [0, 384], sizes = [8, 128], strides = [1, 1]} : vector<8x512xf32> to vector<8x128xf32>
    %cst_71 = arith.constant 5.000000e-01 : f32
    %210 = vector.broadcast %cst_71 : f32 to vector<8x128xf32>
    %211 = arith.mulf %210, %209 : vector<8x128xf32>
    %212 = math.tanh %211 : vector<8x128xf32>
    %cst_72 = arith.constant 1.000000e+00 : f32
    %213 = vector.broadcast %cst_72 : f32 to vector<8x128xf32>
    %214 = arith.addf %212, %213 : vector<8x128xf32>
    %cst_73 = arith.constant 5.000000e-01 : f32
    %215 = vector.broadcast %cst_73 : f32 to vector<8x128xf32>
    %216 = arith.mulf %215, %214 : vector<8x128xf32>
    %217 = arith.mulf %206, %185 : vector<8x128xf32>
    %218 = arith.mulf %198, %208 : vector<8x128xf32>
    %219 = arith.addf %217, %218 : vector<8x128xf32>
    %220 = math.tanh %219 : vector<8x128xf32>
    %221 = arith.mulf %216, %220 : vector<8x128xf32>
    %222 = vector.extract_strided_slice %14 {offsets = [48, 0], sizes = [8, 512], strides = [1, 1]} : vector<64x512xf32> to vector<8x512xf32>
    %cst_74 = arith.constant dense<0.000000e+00> : vector<8x512xf32>
    %223 = tpu.matmul %221, %15, %cst_74 {dimension_numbers = #tpu.dot_dimension_numbers<[1], [0], [0], [1], [0, 0, 1, 1], [], []>} : vector<8x128xf32>, vector<128x512xf32>, vector<8x512xf32> -> vector<8x512xf32>
    %224 = arith.addf %222, %223 : vector<8x512xf32>
    %225 = vector.extract_strided_slice %224 {offsets = [0, 0], sizes = [8, 128], strides = [1, 1]} : vector<8x512xf32> to vector<8x128xf32>
    %cst_75 = arith.constant 5.000000e-01 : f32
    %226 = vector.broadcast %cst_75 : f32 to vector<8x128xf32>
    %227 = arith.mulf %226, %225 : vector<8x128xf32>
    %228 = math.tanh %227 : vector<8x128xf32>
    %cst_76 = arith.constant 1.000000e+00 : f32
    %229 = vector.broadcast %cst_76 : f32 to vector<8x128xf32>
    %230 = arith.addf %228, %229 : vector<8x128xf32>
    %cst_77 = arith.constant 5.000000e-01 : f32
    %231 = vector.broadcast %cst_77 : f32 to vector<8x128xf32>
    %232 = arith.mulf %231, %230 : vector<8x128xf32>
    %233 = vector.extract_strided_slice %224 {offsets = [0, 128], sizes = [8, 128], strides = [1, 1]} : vector<8x512xf32> to vector<8x128xf32>
    %cst_78 = arith.constant 5.000000e-01 : f32
    %234 = vector.broadcast %cst_78 : f32 to vector<8x128xf32>
    %235 = arith.mulf %234, %233 : vector<8x128xf32>
    %236 = math.tanh %235 : vector<8x128xf32>
    %cst_79 = arith.constant 1.000000e+00 : f32
    %237 = vector.broadcast %cst_79 : f32 to vector<8x128xf32>
    %238 = arith.addf %236, %237 : vector<8x128xf32>
    %cst_80 = arith.constant 5.000000e-01 : f32
    %239 = vector.broadcast %cst_80 : f32 to vector<8x128xf32>
    %240 = arith.mulf %239, %238 : vector<8x128xf32>
    %241 = vector.extract_strided_slice %224 {offsets = [0, 256], sizes = [8, 128], strides = [1, 1]} : vector<8x512xf32> to vector<8x128xf32>
    %242 = math.tanh %241 : vector<8x128xf32>
    %243 = vector.extract_strided_slice %224 {offsets = [0, 384], sizes = [8, 128], strides = [1, 1]} : vector<8x512xf32> to vector<8x128xf32>
    %cst_81 = arith.constant 5.000000e-01 : f32
    %244 = vector.broadcast %cst_81 : f32 to vector<8x128xf32>
    %245 = arith.mulf %244, %243 : vector<8x128xf32>
    %246 = math.tanh %245 : vector<8x128xf32>
    %cst_82 = arith.constant 1.000000e+00 : f32
    %247 = vector.broadcast %cst_82 : f32 to vector<8x128xf32>
    %248 = arith.addf %246, %247 : vector<8x128xf32>
    %cst_83 = arith.constant 5.000000e-01 : f32
    %249 = vector.broadcast %cst_83 : f32 to vector<8x128xf32>
    %250 = arith.mulf %249, %248 : vector<8x128xf32>
    %251 = arith.mulf %240, %219 : vector<8x128xf32>
    %252 = arith.mulf %232, %242 : vector<8x128xf32>
    %253 = arith.addf %251, %252 : vector<8x128xf32>
    %254 = math.tanh %253 : vector<8x128xf32>
    %255 = arith.mulf %250, %254 : vector<8x128xf32>
    %256 = vector.extract_strided_slice %14 {offsets = [56, 0], sizes = [8, 512], strides = [1, 1]} : vector<64x512xf32> to vector<8x512xf32>
    %cst_84 = arith.constant dense<0.000000e+00> : vector<8x512xf32>
    %257 = tpu.matmul %255, %15, %cst_84 {dimension_numbers = #tpu.dot_dimension_numbers<[1], [0], [0], [1], [0, 0, 1, 1], [], []>} : vector<8x128xf32>, vector<128x512xf32>, vector<8x512xf32> -> vector<8x512xf32>
    %258 = arith.addf %256, %257 : vector<8x512xf32>
    %259 = vector.extract_strided_slice %258 {offsets = [0, 0], sizes = [8, 128], strides = [1, 1]} : vector<8x512xf32> to vector<8x128xf32>
    %cst_85 = arith.constant 5.000000e-01 : f32
    %260 = vector.broadcast %cst_85 : f32 to vector<8x128xf32>
    %261 = arith.mulf %260, %259 : vector<8x128xf32>
    %262 = math.tanh %261 : vector<8x128xf32>
    %cst_86 = arith.constant 1.000000e+00 : f32
    %263 = vector.broadcast %cst_86 : f32 to vector<8x128xf32>
    %264 = arith.addf %262, %263 : vector<8x128xf32>
    %cst_87 = arith.constant 5.000000e-01 : f32
    %265 = vector.broadcast %cst_87 : f32 to vector<8x128xf32>
    %266 = arith.mulf %265, %264 : vector<8x128xf32>
    %267 = vector.extract_strided_slice %258 {offsets = [0, 128], sizes = [8, 128], strides = [1, 1]} : vector<8x512xf32> to vector<8x128xf32>
    %cst_88 = arith.constant 5.000000e-01 : f32
    %268 = vector.broadcast %cst_88 : f32 to vector<8x128xf32>
    %269 = arith.mulf %268, %267 : vector<8x128xf32>
    %270 = math.tanh %269 : vector<8x128xf32>
    %cst_89 = arith.constant 1.000000e+00 : f32
    %271 = vector.broadcast %cst_89 : f32 to vector<8x128xf32>
    %272 = arith.addf %270, %271 : vector<8x128xf32>
    %cst_90 = arith.constant 5.000000e-01 : f32
    %273 = vector.broadcast %cst_90 : f32 to vector<8x128xf32>
    %274 = arith.mulf %273, %272 : vector<8x128xf32>
    %275 = vector.extract_strided_slice %258 {offsets = [0, 256], sizes = [8, 128], strides = [1, 1]} : vector<8x512xf32> to vector<8x128xf32>
    %276 = math.tanh %275 : vector<8x128xf32>
    %277 = vector.extract_strided_slice %258 {offsets = [0, 384], sizes = [8, 128], strides = [1, 1]} : vector<8x512xf32> to vector<8x128xf32>
    %cst_91 = arith.constant 5.000000e-01 : f32
    %278 = vector.broadcast %cst_91 : f32 to vector<8x128xf32>
    %279 = arith.mulf %278, %277 : vector<8x128xf32>
    %280 = math.tanh %279 : vector<8x128xf32>
    %cst_92 = arith.constant 1.000000e+00 : f32
    %281 = vector.broadcast %cst_92 : f32 to vector<8x128xf32>
    %282 = arith.addf %280, %281 : vector<8x128xf32>
    %cst_93 = arith.constant 5.000000e-01 : f32
    %283 = vector.broadcast %cst_93 : f32 to vector<8x128xf32>
    %284 = arith.mulf %283, %282 : vector<8x128xf32>
    %285 = arith.mulf %274, %253 : vector<8x128xf32>
    %286 = arith.mulf %266, %276 : vector<8x128xf32>
    %287 = arith.addf %285, %286 : vector<8x128xf32>
    %288 = math.tanh %287 : vector<8x128xf32>
    %289 = arith.mulf %284, %288 : vector<8x128xf32>
    %c0_94 = arith.constant 0 : index
    %c0_95 = arith.constant 0 : index
    %290 = vector.load %arg6[%c0_94, %c0_95] : memref<128x256xf32, #tpu.memory_space<vmem>>, vector<128x256xf32>
    %c0_96 = arith.constant 0 : index
    %c0_97 = arith.constant 0 : index
    %291 = vector.load %arg7[%c0_96, %c0_97] : memref<1x256xf32, #tpu.memory_space<vmem>>, vector<1x256xf32>
    %292 = vector.extract_strided_slice %51 {offsets = [0, 0], sizes = [1, 128], strides = [1, 1]} : vector<8x128xf32> to vector<1x128xf32>
    %293 = vector.extract_strided_slice %85 {offsets = [0, 0], sizes = [1, 128], strides = [1, 1]} : vector<8x128xf32> to vector<1x128xf32>
    %294 = vector.extract_strided_slice %119 {offsets = [0, 0], sizes = [1, 128], strides = [1, 1]} : vector<8x128xf32> to vector<1x128xf32>
    %295 = vector.extract_strided_slice %153 {offsets = [0, 0], sizes = [1, 128], strides = [1, 1]} : vector<8x128xf32> to vector<1x128xf32>
    %296 = vector.extract_strided_slice %187 {offsets = [0, 0], sizes = [1, 128], strides = [1, 1]} : vector<8x128xf32> to vector<1x128xf32>
    %297 = vector.extract_strided_slice %221 {offsets = [0, 0], sizes = [1, 128], strides = [1, 1]} : vector<8x128xf32> to vector<1x128xf32>
    %298 = vector.extract_strided_slice %255 {offsets = [0, 0], sizes = [1, 128], strides = [1, 1]} : vector<8x128xf32> to vector<1x128xf32>
    %299 = vector.extract_strided_slice %289 {offsets = [0, 0], sizes = [1, 128], strides = [1, 1]} : vector<8x128xf32> to vector<1x128xf32>
    %300 = tpu.concatenate %292, %293, %294, %295, %296, %297, %298, %299 in 0 : vector<1x128xf32>, vector<1x128xf32>, vector<1x128xf32>, vector<1x128xf32>, vector<1x128xf32>, vector<1x128xf32>, vector<1x128xf32>, vector<1x128xf32> -> vector<8x128xf32>
    %cst_98 = arith.constant dense<0.000000e+00> : vector<8x256xf32>
    %301 = tpu.matmul %300, %290, %cst_98 {dimension_numbers = #tpu.dot_dimension_numbers<[1], [0], [0], [1], [0, 0, 1, 1], [], []>} : vector<8x128xf32>, vector<128x256xf32>, vector<8x256xf32> -> vector<8x256xf32>
    %302 = vector.broadcast %291 : vector<1x256xf32> to vector<8x256xf32>
    %303 = arith.addf %301, %302 : vector<8x256xf32>
    %c0_99 = arith.constant 0 : index
    %c0_100 = arith.constant 0 : index
    %c0_101 = arith.constant 0 : index
    %304 = vector.load %arg8[%c0_99, %c0_100, %c0_101] : memref<2x8x256xf32, #tpu.memory_space<vmem>>, vector<1x8x256xf32>
    %305 = vector.shape_cast %304 : vector<1x8x256xf32> to vector<8x256xf32>
    %306 = vector.shape_cast %303 : vector<8x256xf32> to vector<1x8x256xf32>
    tpu.vector_store %arg8[%c0_99, %c0_100, %c0_101], %306 {strides = array<i32>} : memref<2x8x256xf32, #tpu.memory_space<vmem>>, vector<1x8x256xf32>,
    %307 = vector.extract_strided_slice %51 {offsets = [1, 0], sizes = [1, 128], strides = [1, 1]} : vector<8x128xf32> to vector<1x128xf32>
    %308 = vector.extract_strided_slice %85 {offsets = [1, 0], sizes = [1, 128], strides = [1, 1]} : vector<8x128xf32> to vector<1x128xf32>
    %309 = vector.extract_strided_slice %119 {offsets = [1, 0], sizes = [1, 128], strides = [1, 1]} : vector<8x128xf32> to vector<1x128xf32>
    %310 = vector.extract_strided_slice %153 {offsets = [1, 0], sizes = [1, 128], strides = [1, 1]} : vector<8x128xf32> to vector<1x128xf32>
    %311 = vector.extract_strided_slice %187 {offsets = [1, 0], sizes = [1, 128], strides = [1, 1]} : vector<8x128xf32> to vector<1x128xf32>
    %312 = vector.extract_strided_slice %221 {offsets = [1, 0], sizes = [1, 128], strides = [1, 1]} : vector<8x128xf32> to vector<1x128xf32>
    %313 = vector.extract_strided_slice %255 {offsets = [1, 0], sizes = [1, 128], strides = [1, 1]} : vector<8x128xf32> to vector<1x128xf32>
    %314 = vector.extract_strided_slice %289 {offsets = [1, 0], sizes = [1, 128], strides = [1, 1]} : vector<8x128xf32> to vector<1x128xf32>
    %315 = tpu.concatenate %307, %308, %309, %310, %311, %312, %313, %314 in 0 : vector<1x128xf32>, vector<1x128xf32>, vector<1x128xf32>, vector<1x128xf32>, vector<1x128xf32>, vector<1x128xf32>, vector<1x128xf32>, vector<1x128xf32> -> vector<8x128xf32>
    %cst_102 = arith.constant dense<0.000000e+00> : vector<8x256xf32>
    %316 = tpu.matmul %315, %290, %cst_102 {dimension_numbers = #tpu.dot_dimension_numbers<[1], [0], [0], [1], [0, 0, 1, 1], [], []>} : vector<8x128xf32>, vector<128x256xf32>, vector<8x256xf32> -> vector<8x256xf32>
    %317 = vector.broadcast %291 : vector<1x256xf32> to vector<8x256xf32>
    %318 = arith.addf %316, %317 : vector<8x256xf32>
    %c1 = arith.constant 1 : index
    %c0_103 = arith.constant 0 : index
    %c0_104 = arith.constant 0 : index
    %319 = vector.load %arg8[%c1, %c0_103, %c0_104] : memref<2x8x256xf32, #tpu.memory_space<vmem>>, vector<1x8x256xf32>
    %320 = vector.shape_cast %319 : vector<1x8x256xf32> to vector<8x256xf32>
    %321 = vector.shape_cast %318 : vector<8x256xf32> to vector<1x8x256xf32>
    tpu.vector_store %arg8[%c1, %c0_103, %c0_104], %321 {strides = array<i32>} : memref<2x8x256xf32, #tpu.memory_space<vmem>>, vector<1x8x256xf32>,
    return
  }
}

</mosaic_0001>

<llo_original>
// kernel: decoder_forward.1
$region0: #{decoder_forward.1}
  #allocation0 [shape = 'u32[]', space=smem, size = 0x4, offset = 0x4, fixed_abs, tag = 'smem constant byte address 0x4 - core index']
  #allocation1 [shape = 'u32[144,128]{1,0:T(1,128)}', space=vmem, size = 0x12000, scoped, tag = 'internal scratch']
  %s0 = inlined_call_operand.vmem [shape: s32[56,1], index: 0, kind: input, shape index: {}]
  %s1 = inlined_call_operand.vmem [shape: f32[8,64], index: 1, kind: input, shape index: {}]
  %s2 = inlined_call_operand.vmem [shape: f32[256,64], index: 2, kind: input, shape index: {}]
  %s3 = inlined_call_operand.hbm [shape: f32[64,512], index: 3, kind: input, shape index: {}]
  %s4 = inlined_call_operand.vmem [shape: f32[128,512], index: 4, kind: input, shape index: {}]
  %s5 = inlined_call_operand.vmem [shape: f32[1,512], index: 5, kind: input, shape index: {}]
  %s6 = inlined_call_operand.hbm [shape: f32[128,256], index: 6, kind: input, shape index: {}]
  %s7 = inlined_call_operand.vmem [shape: f32[1,256], index: 7, kind: input, shape index: {}]
  %s8 = inlined_call_operand.hbm [shape: f32[2,8,256], index: 8, kind: output, shape index: {}]
  %s9 = sld [smem:[#allocation0]]
  $region50: #{decoder_forward.1} parent=0
    _
  %s11 = ssub.s32 1, %s9
  %s12 = scalar_select 0, %s11, %s9
  $region1: #{decoder_forward.1} parent=0
    #allocation2 [shape = 'u8[131072]{0}', space=vmem, size = 0x20000, scoped, tag = 'input window, operand 3, single buffered']
    #allocation3 [shape = 's32[1]{0}', space=sflag, size = 0x4, scoped, tag = 'scoped memory for decoder_forward.1']
    #allocation4 [shape = 's32[1]{0}', space=sflag, size = 0x4, scoped, tag = 'scoped memory for decoder_forward.1']
    #allocation5 [shape = 'u8[131072]{0}', space=vmem, size = 0x20000, scoped, tag = 'input window, operand 6, single buffered']
    #allocation6 [shape = 's32[1]{0}', space=sflag, size = 0x4, scoped, tag = 'scoped memory for decoder_forward.1']
    #allocation7 [shape = 'u8[16384]{0}', space=vmem, size = 0x4000, scoped, tag = 'output window, operand 0, single buffered']
    %13 = vsyncpa [#allocation3], 0
    %14 = vsyncpa [#allocation6], 0
    %15 = vsyncpa [#allocation4], 0
    // Predicated region
    $region2: #{decoder_forward.1} parent=1 // pred_check
      _
    $region3: #{decoder_forward.1} parent=1 // pred_check_branch
      %17 = sbr.rel (0) target = $region5
    $region4: #{decoder_forward.1} parent=1 // pred_region
      _
    $region5: #{decoder_forward.1} parent=1 // pred_fallthru
      _
    // Predicated region
    $region6: #{decoder_forward.1} parent=1 // pred_check
      _
    $region7: #{decoder_forward.1} parent=1 // pred_check_branch
      %19 = sbr.rel (0) target = $region9
    $region8: #{decoder_forward.1} parent=1 // pred_region
      _
    $region9: #{decoder_forward.1} parent=1 // pred_fallthru
      _
    // Predicated region
    $region10: #{decoder_forward.1} parent=1 // pred_check
      _
    $region11: #{decoder_forward.1} parent=1 // pred_check_branch
      %21 = sbr.rel (0) target = $region13
    $region12: #{decoder_forward.1} parent=1 // pred_region
      _
    $region13: #{decoder_forward.1} parent=1 // pred_fallthru
      _
    // Predicated region
    $region14: #{decoder_forward.1} parent=1 // pred_check
      _
    $region15: #{decoder_forward.1} parent=1 // pred_check_branch
      %23 = sbr.rel (0) target = $region17
    $region16: #{decoder_forward.1} parent=1 // pred_region
      %s25 = ssub.s32 4096, 4096
      %26 = vsyncadd [#allocation3], %s25
      %s27 = sshll.u32 [#allocation2], 4
      %s28 = int_to_ptr.vmem [resolvable:$true] %s27
      %33 = dma.hbm_to_vmem [thread:$0]  %s3, 4096, %s28, [#allocation3], 512, 512, 32
    $region17: #{decoder_forward.1} parent=1 // pred_fallthru
      _
    // Predicated region
    $region18: #{decoder_forward.1} parent=1 // pred_check
      _
    $region19: #{decoder_forward.1} parent=1 // pred_check_branch
      %35 = sbr.rel (0) target = $region21
    $region20: #{decoder_forward.1} parent=1 // pred_region
      _
    $region21: #{decoder_forward.1} parent=1 // pred_fallthru
      _
    // Predicated region
    $region22: #{decoder_forward.1} parent=1 // pred_check
      _
    $region23: #{decoder_forward.1} parent=1 // pred_check_branch
      %37 = sbr.rel (0) target = $region25
    $region24: #{decoder_forward.1} parent=1 // pred_region
      _
    $region25: #{decoder_forward.1} parent=1 // pred_fallthru
      _
    // Predicated region
    $region26: #{decoder_forward.1} parent=1 // pred_check
      _
    $region27: #{decoder_forward.1} parent=1 // pred_check_branch
      %39 = sbr.rel (0) target = $region29
    $region28: #{decoder_forward.1} parent=1 // pred_region
      %s41 = ssub.s32 4096, 4096
      %42 = vsyncadd [#allocation6], %s41
      %s43 = sshll.u32 [#allocation5], 4
      %s44 = int_to_ptr.vmem [resolvable:$true] %s43
      %49 = dma.hbm_to_vmem [thread:$0]  %s6, 4096, %s44, [#allocation6], 256, 256, 16
    $region29: #{decoder_forward.1} parent=1 // pred_fallthru
      _
    // Predicated region
    $region30: #{decoder_forward.1} parent=1 // pred_check
      _
    $region31: #{decoder_forward.1} parent=1 // pred_check_branch
      %51 = sbr.rel (0) target = $region33
    $region32: #{decoder_forward.1} parent=1 // pred_region
      _
    $region33: #{decoder_forward.1} parent=1 // pred_fallthru
      _
    // Predicated region
    $region34: #{decoder_forward.1} parent=1 // pred_check
      _
    $region35: #{decoder_forward.1} parent=1 // pred_check_branch
      %53 = sbr.rel (0) target = $region37
    $region36: #{decoder_forward.1} parent=1 // pred_region
      %54 = dma.done [#allocation3], 4096
    $region37: #{decoder_forward.1} parent=1 // pred_fallthru
      _
    // Predicated region
    $region38: #{decoder_forward.1} parent=1 // pred_check
      _
    $region39: #{decoder_forward.1} parent=1 // pred_check_branch
      %56 = sbr.rel (0) target = $region41
    $region40: #{decoder_forward.1} parent=1 // pred_region
      %57 = dma.done [#allocation6], 4096
    $region41: #{decoder_forward.1} parent=1 // pred_fallthru
      _
    %v58 = vlaneseq
    %v59 = vand.u32 %v58, 127
    %v60 = vadd.s32 %v59, 128
    %v61 = vld [vmem:[%s0] sm:$0xff]
    %v62 = vld [vmem:[%s0 + $0x8] sm:$0xff]
    %v63 = vld [vmem:[%s0 + $0x10] sm:$0xff]
    %v64 = vld [vmem:[%s0 + $0x18] sm:$0xff]
    %v65 = vld [vmem:[%s0 + $0x20] sm:$0xff]
    %v66 = vld [vmem:[%s0 + $0x28] sm:$0xff]
    %v67 = vld [vmem:[%s0 + $0x30] sm:$0xff]
    %68 = vset.pattern.permute.xlu0 0
    %69 = vperm.xlu0 %68, %v61
    %v70 = vpop.permute.xlu0 %69
    %71 = vset.pattern.permute.xlu0 0
    %72 = vperm.xlu0 %71, %v62
    %v73 = vpop.permute.xlu0 %72
    %74 = vset.pattern.permute.xlu0 0
    %75 = vperm.xlu0 %74, %v63
    %v76 = vpop.permute.xlu0 %75
    %77 = vset.pattern.permute.xlu0 0
    %78 = vperm.xlu0 %77, %v64
    %v79 = vpop.permute.xlu0 %78
    %80 = vset.pattern.permute.xlu0 0
    %81 = vperm.xlu0 %80, %v65
    %v82 = vpop.permute.xlu0 %81
    %83 = vset.pattern.permute.xlu0 0
    %84 = vperm.xlu0 %83, %v66
    %v85 = vpop.permute.xlu0 %84
    %86 = vset.pattern.permute.xlu0 0
    %87 = vperm.xlu0 %86, %v67
    %v88 = vpop.permute.xlu0 %87
    %vm89 = vcmp.eq.s32.totalorder %v59, %v70
    %vm90 = vcmp.eq.s32.totalorder %v60, %v70
    %vm91 = vcmp.eq.s32.totalorder %v59, %v73
    %vm92 = vcmp.eq.s32.totalorder %v60, %v73
    %vm93 = vcmp.eq.s32.totalorder %v59, %v76
    %vm94 = vcmp.eq.s32.totalorder %v60, %v76
    %vm95 = vcmp.eq.s32.totalorder %v59, %v79
    %vm96 = vcmp.eq.s32.totalorder %v60, %v79
    %vm97 = vcmp.eq.s32.totalorder %v59, %v82
    %vm98 = vcmp.eq.s32.totalorder %v60, %v82
    %vm99 = vcmp.eq.s32.totalorder %v59, %v85
    %vm100 = vcmp.eq.s32.totalorder %v60, %v85
    %vm101 = vcmp.eq.s32.totalorder %v59, %v88
    %vm102 = vcmp.eq.s32.totalorder %v60, %v88
    %v103 = vsel %vm89, 1, 0
    %v104 = vsel %vm90, 1, 0
    %v105 = vsel %vm91, 1, 0
    %v106 = vsel %vm92, 1, 0
    %v107 = vsel %vm93, 1, 0
    %v108 = vsel %vm94, 1, 0
    %v109 = vsel %vm95, 1, 0
    %v110 = vsel %vm96, 1, 0
    %v111 = vsel %vm97, 1, 0
    %v112 = vsel %vm98, 1, 0
    %v113 = vsel %vm99, 1, 0
    %v114 = vsel %vm100, 1, 0
    %v115 = vsel %vm101, 1, 0
    %v116 = vsel %vm102, 1, 0
    %v117 = vcvt.s32.f32 %v103
    %v118 = vcvt.s32.f32 %v104
    %v119 = vcvt.s32.f32 %v105
    %v120 = vcvt.s32.f32 %v106
    %v121 = vcvt.s32.f32 %v107
    %v122 = vcvt.s32.f32 %v108
    %v123 = vcvt.s32.f32 %v109
    %v124 = vcvt.s32.f32 %v110
    %v125 = vcvt.s32.f32 %v111
    %v126 = vcvt.s32.f32 %v112
    %v127 = vcvt.s32.f32 %v113
    %v128 = vcvt.s32.f32 %v114
    %v129 = vcvt.s32.f32 %v115
    %v130 = vcvt.s32.f32 %v116
    %v131 = vld [vmem:[%s2] sm:$0xff]
    %v132 = vld [vmem:[%s2 + $0x8] sm:$0xff]
    %v133 = vld [vmem:[%s2 + $0x10] sm:$0xff]
    %v134 = vld [vmem:[%s2 + $0x18] sm:$0xff]
    %v135 = vld [vmem:[%s2 + $0x20] sm:$0xff]
    %v136 = vld [vmem:[%s2 + $0x28] sm:$0xff]
    %v137 = vld [vmem:[%s2 + $0x30] sm:$0xff]
    %v138 = vld [vmem:[%s2 + $0x38] sm:$0xff]
    %v139 = vld [vmem:[%s2 + $0x40] sm:$0xff]
    %v140 = vld [vmem:[%s2 + $0x48] sm:$0xff]
    %v141 = vld [vmem:[%s2 + $0x50] sm:$0xff]
    %v142 = vld [vmem:[%s2 + $0x58] sm:$0xff]
    %v143 = vld [vmem:[%s2 + $0x60] sm:$0xff]
    %v144 = vld [vmem:[%s2 + $0x68] sm:$0xff]
    %v145 = vld [vmem:[%s2 + $0x70] sm:$0xff]
    %v146 = vld [vmem:[%s2 + $0x78] sm:$0xff]
    %v147 = vld [vmem:[%s2 + $0x80] sm:$0xff]
    %v148 = vld [vmem:[%s2 + $0x88] sm:$0xff]
    %v149 = vld [vmem:[%s2 + $0x90] sm:$0xff]
    %v150 = vld [vmem:[%s2 + $0x98] sm:$0xff]
    %v151 = vld [vmem:[%s2 + $0xa0] sm:$0xff]
    %v152 = vld [vmem:[%s2 + $0xa8] sm:$0xff]
    %v153 = vld [vmem:[%s2 + $0xb0] sm:$0xff]
    %v154 = vld [vmem:[%s2 + $0xb8] sm:$0xff]
    %v155 = vld [vmem:[%s2 + $0xc0] sm:$0xff]
    %v156 = vld [vmem:[%s2 + $0xc8] sm:$0xff]
    %v157 = vld [vmem:[%s2 + $0xd0] sm:$0xff]
    %v158 = vld [vmem:[%s2 + $0xd8] sm:$0xff]
    %v159 = vld [vmem:[%s2 + $0xe0] sm:$0xff]
    %v160 = vld [vmem:[%s2 + $0xe8] sm:$0xff]
    %v161 = vld [vmem:[%s2 + $0xf0] sm:$0xff]
    %v162 = vld [vmem:[%s2 + $0xf8] sm:$0xff]
    %163 = vmatprep.subr.mxu0 0.0
    %164 = vmatpush1.msra.mxu0 %v131
    %165 = vmatprep.subr.mxu0 0.0
    %166 = vmatpush1.msra.mxu0 %v132
    %167 = vmatprep.subr.mxu0 0.0
    %168 = vmatpush1.msra.mxu0 %v133
    %169 = vmatprep.subr.mxu0 0.0
    %170 = vmatpush1.msra.mxu0 %v134
    %171 = vmatprep.subr.mxu0 0.0
    %172 = vmatpush1.msra.mxu0 %v135
    %173 = vmatprep.subr.mxu0 0.0
    %174 = vmatpush1.msra.mxu0 %v136
    %175 = vmatprep.subr.mxu0 0.0
    %176 = vmatpush1.msra.mxu0 %v137
    %177 = vmatprep.subr.mxu0 0.0
    %178 = vmatpush1.msra.mxu0 %v138
    %179 = vmatprep.subr.mxu0 0.0
    %180 = vmatpush1.msra.mxu0 %v139
    %181 = vmatprep.subr.mxu0 0.0
    %182 = vmatpush1.msra.mxu0 %v140
    %183 = vmatprep.subr.mxu0 0.0
    %184 = vmatpush1.msra.mxu0 %v141
    %185 = vmatprep.subr.mxu0 0.0
    %186 = vmatpush1.msra.mxu0 %v142
    %187 = vmatprep.subr.mxu0 0.0
    %188 = vmatpush1.msra.mxu0 %v143
    %189 = vmatprep.subr.mxu0 0.0
    %190 = vmatpush1.msra.mxu0 %v144
    %191 = vmatprep.subr.mxu0 0.0
    %192 = vmatpush1.msra.mxu0 %v145
    %193 = vmatprep.subr.mxu0 0.0
    %194 = vmatpush1.msra.mxu0 %v146
    %195 = vmatprep.subr.mxu0 0.0
    %196 = vmatpush1.msra.mxu0 %v147
    %197 = vmatprep.subr.mxu0 0.0
    %198 = vmatpush1.msra.mxu0 %v148
    %199 = vmatprep.subr.mxu0 0.0
    %200 = vmatpush1.msra.mxu0 %v149
    %201 = vmatprep.subr.mxu0 0.0
    %202 = vmatpush1.msra.mxu0 %v150
    %203 = vmatprep.subr.mxu0 0.0
    %204 = vmatpush1.msra.mxu0 %v151
    %205 = vmatprep.subr.mxu0 0.0
    %206 = vmatpush1.msra.mxu0 %v152
    %207 = vmatprep.subr.mxu0 0.0
    %208 = vmatpush1.msra.mxu0 %v153
    %209 = vmatprep.subr.mxu0 0.0
    %210 = vmatpush1.msra.mxu0 %v154
    %211 = vmatprep.subr.mxu0 0.0
    %212 = vmatpush1.msra.mxu0 %v155
    %213 = vmatprep.subr.mxu0 0.0
    %214 = vmatpush1.msra.mxu0 %v156
    %215 = vmatprep.subr.mxu0 0.0
    %216 = vmatpush1.msra.mxu0 %v157
    %217 = vmatprep.subr.mxu0 0.0
    %218 = vmatpush1.msra.mxu0 %v158
    %219 = vmatprep.subr.mxu0 0.0
    %220 = vmatpush1.msra.mxu0 %v159
    %221 = vmatprep.subr.mxu0 0.0
    %222 = vmatpush1.msra.mxu0 %v160
    %223 = vmatprep.subr.mxu0 0.0
    %224 = vmatpush1.msra.mxu0 %v161
    %225 = vmatprep.subr.mxu0 0.0
    %226 = vmatpush1.msra.mxu0 %v162
    %227 = vmatprep.mubr.f32.mxu0 %v118
    %228 = vmatmul.mubr.f32.gmra.mrb[0].mxu0 %v117
    %v229 = vpop.f32.mrb[0].mxu0
    %v230 = vadd.f32 0.0, %v229
    %v231 = vpop.f32.mrb[0].mxu0
    %232 = vmatprep.mubr.f32.mxu0 %v120
    %233 = vmatmul.mubr.f32.gmra.mrb[0].mxu0 %v119
    %v234 = vpop.f32.mrb[0].mxu0
    %v235 = vadd.f32 0.0, %v234
    %v236 = vpop.f32.mrb[0].mxu0
    %237 = vmatprep.mubr.f32.mxu0 %v122
    %238 = vmatmul.mubr.f32.gmra.mrb[0].mxu0 %v121
    %v239 = vpop.f32.mrb[0].mxu0
    %v240 = vadd.f32 0.0, %v239
    %v241 = vpop.f32.mrb[0].mxu0
    %242 = vmatprep.mubr.f32.mxu0 %v124
    %243 = vmatmul.mubr.f32.gmra.mrb[0].mxu0 %v123
    %v244 = vpop.f32.mrb[0].mxu0
    %v245 = vadd.f32 0.0, %v244
    %v246 = vpop.f32.mrb[0].mxu0
    %247 = vmatprep.mubr.f32.mxu0 %v126
    %248 = vmatmul.mubr.f32.gmra.mrb[0].mxu0 %v125
    %v249 = vpop.f32.mrb[0].mxu0
    %v250 = vadd.f32 0.0, %v249
    %v251 = vpop.f32.mrb[0].mxu0
    %252 = vmatprep.mubr.f32.mxu0 %v128
    %253 = vmatmul.mubr.f32.gmra.mrb[0].mxu0 %v127
    %v254 = vpop.f32.mrb[0].mxu0
    %v255 = vadd.f32 0.0, %v254
    %v256 = vpop.f32.mrb[0].mxu0
    %257 = vmatprep.mubr.f32.mxu0 %v130
    %258 = vmatmul.mubr.f32.gmra.mrb[0].mxu0 %v129
    %v259 = vpop.f32.mrb[0].mxu0
    %v260 = vadd.f32 0.0, %v259
    %v261 = vpop.f32.mrb[0].mxu0
    %262 = vdwg.mxu0
    %v263 = vld [vmem:[%s1] sm:$0xff]
    %v264 = vld [vmem:[#allocation2] sm:$0xff]
    %v265 = vld [vmem:[#allocation2 + $0x8] sm:$0xff]
    %v266 = vld [vmem:[#allocation2 + $0x10] sm:$0xff]
    %v267 = vld [vmem:[#allocation2 + $0x18] sm:$0xff]
    %v268 = vld [vmem:[#allocation2 + $0x20] sm:$0xff]
    %v269 = vld [vmem:[#allocation2 + $0x28] sm:$0xff]
    %v270 = vld [vmem:[#allocation2 + $0x30] sm:$0xff]
    %v271 = vld [vmem:[#allocation2 + $0x38] sm:$0xff]
    %v272 = vld [vmem:[#allocation2 + $0x40] sm:$0xff]
    %v273 = vld [vmem:[#allocation2 + $0x48] sm:$0xff]
    %v274 = vld [vmem:[#allocation2 + $0x50] sm:$0xff]
    %v275 = vld [vmem:[#allocation2 + $0x58] sm:$0xff]
    %v276 = vld [vmem:[#allocation2 + $0x60] sm:$0xff]
    %v277 = vld [vmem:[#allocation2 + $0x68] sm:$0xff]
    %v278 = vld [vmem:[#allocation2 + $0x70] sm:$0xff]
    %v279 = vld [vmem:[#allocation2 + $0x78] sm:$0xff]
    %v280 = vld [vmem:[#allocation2 + $0x80] sm:$0xff]
    %v281 = vld [vmem:[#allocation2 + $0x88] sm:$0xff]
    %v282 = vld [vmem:[#allocation2 + $0x90] sm:$0xff]
    %v283 = vld [vmem:[#allocation2 + $0x98] sm:$0xff]
    %v284 = vld [vmem:[#allocation2 + $0xa0] sm:$0xff]
    %v285 = vld [vmem:[#allocation2 + $0xa8] sm:$0xff]
    %v286 = vld [vmem:[#allocation2 + $0xb0] sm:$0xff]
    %v287 = vld [vmem:[#allocation2 + $0xb8] sm:$0xff]
    %v288 = vld [vmem:[#allocation2 + $0xc0] sm:$0xff]
    %v289 = vld [vmem:[#allocation2 + $0xc8] sm:$0xff]
    %v290 = vld [vmem:[#allocation2 + $0xd0] sm:$0xff]
    %v291 = vld [vmem:[#allocation2 + $0xd8] sm:$0xff]
    %v292 = vld [vmem:[#allocation2 + $0xe0] sm:$0xff]
    %v293 = vld [vmem:[#allocation2 + $0xe8] sm:$0xff]
    %v294 = vld [vmem:[#allocation2 + $0xf0] sm:$0xff]
    %v295 = vld [vmem:[#allocation2 + $0xf8] sm:$0xff]
    %v296 = vld [vmem:[%s5] sm:$0xf]
    %v298 = vlaneseq
    %v299 = vshrl.u32 %v298, 7
    %v300 = vsub.s32 0, %v299
    %v301 = vrot.slane %v296, %v300
    %v302 = vlaneseq
    %v303 = vshrl.u32 %v302, 7
    %v304 = vsub.s32 1, %v303
    %v305 = vrot.slane %v296, %v304
    %v306 = vlaneseq
    %v307 = vshrl.u32 %v306, 7
    %v308 = vsub.s32 2, %v307
    %v309 = vrot.slane %v296, %v308
    %v310 = vlaneseq
    %v311 = vshrl.u32 %v310, 7
    %v312 = vsub.s32 3, %v311
    %v313 = vrot.slane %v296, %v312
    %vm318 = vcmask 523264
    %v320 = vsel %vm318, %v263, 0
    %v323 = vsel %vm318, %v230, 0
    %v326 = vsel %vm318, %v235, 0
    %v329 = vsel %vm318, %v240, 0
    %v332 = vsel %vm318, %v245, 0
    %v335 = vsel %vm318, %v250, 0
    %v338 = vsel %vm318, %v255, 0
    %v341 = vsel %vm318, %v260, 0
    %343 = vmatprep.subr.mxu0 %v265
    %344 = vmatpush1.msra.mxu0 %v264
    %345 = vmatprep.subr.mxu0 %v269
    %346 = vmatpush1.msra.mxu0 %v268
    %347 = vmatprep.subr.mxu0 %v273
    %348 = vmatpush1.msra.mxu0 %v272
    %349 = vmatprep.subr.mxu0 %v277
    %350 = vmatpush1.msra.mxu0 %v276
    %351 = vmatprep.subr.mxu0 %v281
    %352 = vmatpush1.msra.mxu0 %v280
    %353 = vmatprep.subr.mxu0 %v285
    %354 = vmatpush1.msra.mxu0 %v284
    %355 = vmatprep.subr.mxu0 %v289
    %356 = vmatpush1.msra.mxu0 %v288
    %357 = vmatprep.subr.mxu0 %v293
    %358 = vmatpush1.msra.mxu0 %v292
    %359 = vmatprep.subr.mxu0 0.0
    %360 = vmatpush1.msra.mxu0 0.0
    %361 = vmatprep.subr.mxu0 0.0
    %362 = vmatpush1.msra.mxu0 0.0
    %363 = vmatprep.subr.mxu0 0.0
    %364 = vmatpush1.msra.mxu0 0.0
    %365 = vmatprep.subr.mxu0 0.0
    %366 = vmatpush1.msra.mxu0 0.0
    %367 = vmatprep.subr.mxu0 0.0
    %368 = vmatpush1.msra.mxu0 0.0
    %369 = vmatprep.subr.mxu0 0.0
    %370 = vmatpush1.msra.mxu0 0.0
    %371 = vmatprep.subr.mxu0 0.0
    %372 = vmatpush1.msra.mxu0 0.0
    %373 = vmatprep.subr.mxu0 0.0
    %374 = vmatpush1.msra.mxu0 0.0
    %375 = vmatprep.subr.mxu0 0.0
    %376 = vmatpush1.msra.mxu0 0.0
    %377 = vmatprep.subr.mxu0 0.0
    %378 = vmatpush1.msra.mxu0 0.0
    %379 = vmatprep.subr.mxu0 0.0
    %380 = vmatpush1.msra.mxu0 0.0
    %381 = vmatprep.subr.mxu0 0.0
    %382 = vmatpush1.msra.mxu0 0.0
    %383 = vmatprep.subr.mxu0 0.0
    %384 = vmatpush1.msra.mxu0 0.0
    %385 = vmatprep.subr.mxu0 0.0
    %386 = vmatpush1.msra.mxu0 0.0
    %387 = vmatprep.subr.mxu0 0.0
    %388 = vmatpush1.msra.mxu0 0.0
    %389 = vmatprep.subr.mxu0 0.0
    %390 = vmatpush1.msra.mxu0 0.0
    %391 = vmatprep.subr.mxu0 0.0
    %392 = vmatpush1.msra.mxu0 0.0
    %393 = vmatprep.subr.mxu0 0.0
    %394 = vmatpush1.msra.mxu0 0.0
    %395 = vmatprep.subr.mxu0 0.0
    %396 = vmatpush1.msra.mxu0 0.0
    %397 = vmatprep.subr.mxu0 0.0
    %398 = vmatpush1.msra.mxu0 0.0
    %399 = vmatprep.subr.mxu0 0.0
    %400 = vmatpush1.msra.mxu0 0.0
    %401 = vmatprep.subr.mxu0 0.0
    %402 = vmatpush1.msra.mxu0 0.0
    %403 = vmatprep.subr.mxu0 0.0
    %404 = vmatpush1.msra.mxu0 0.0
    %405 = vmatprep.subr.mxu0 0.0
    %406 = vmatpush1.msra.mxu0 0.0
    %407 = vmatprep.mubr.f32.mxu0 0.0
    %408 = vmatmul.mubr.f32.gmra.mrb[0].mxu0 %v320
    %v409 = vpop.f32.mrb[0].mxu0
    %v410 = vadd.f32 %v301, %v409
    %v411 = vpop.f32.mrb[0].mxu0
    %v412 = vadd.f32 %v305, %v411
    %413 = vmatprep.mubr.f32.mxu0 0.0
    %414 = vmatmul.mubr.f32.gmra.mrb[0].mxu0 %v323
    %v415 = vpop.f32.mrb[0].mxu0
    %v416 = vadd.f32 %v301, %v415
    %v417 = vpop.f32.mrb[0].mxu0
    %v418 = vadd.f32 %v305, %v417
    %419 = vmatprep.mubr.f32.mxu0 0.0
    %420 = vmatmul.mubr.f32.gmra.mrb[0].mxu0 %v326
    %v421 = vpop.f32.mrb[0].mxu0
    %v422 = vadd.f32 %v301, %v421
    %v423 = vpop.f32.mrb[0].mxu0
    %v424 = vadd.f32 %v305, %v423
    %425 = vmatprep.mubr.f32.mxu0 0.0
    %426 = vmatmul.mubr.f32.gmra.mrb[0].mxu0 %v329
    %v427 = vpop.f32.mrb[0].mxu0
    %v428 = vadd.f32 %v301, %v427
    %v429 = vpop.f32.mrb[0].mxu0
    %v430 = vadd.f32 %v305, %v429
    %431 = vmatprep.mubr.f32.mxu0 0.0
    %432 = vmatmul.mubr.f32.gmra.mrb[0].mxu0 %v332
    %v433 = vpop.f32.mrb[0].mxu0
    %v434 = vadd.f32 %v301, %v433
    %v435 = vpop.f32.mrb[0].mxu0
    %v436 = vadd.f32 %v305, %v435
    %437 = vmatprep.mubr.f32.mxu0 0.0
    %438 = vmatmul.mubr.f32.gmra.mrb[0].mxu0 %v335
    %v439 = vpop.f32.mrb[0].mxu0
    %v440 = vadd.f32 %v301, %v439
    %v441 = vpop.f32.mrb[0].mxu0
    %v442 = vadd.f32 %v305, %v441
    %443 = vmatprep.mubr.f32.mxu0 0.0
    %444 = vmatmul.mubr.f32.gmra.mrb[0].mxu0 %v338
    %v445 = vpop.f32.mrb[0].mxu0
    %v446 = vadd.f32 %v301, %v445
    %v447 = vpop.f32.mrb[0].mxu0
    %v448 = vadd.f32 %v305, %v447
    %449 = vmatprep.mubr.f32.mxu0 0.0
    %450 = vmatmul.mubr.f32.gmra.mrb[0].mxu0 %v341
    %v451 = vpop.f32.mrb[0].mxu0
    %v452 = vadd.f32 %v301, %v451
    %v453 = vpop.f32.mrb[0].mxu0
    %v454 = vadd.f32 %v305, %v453
    %455 = vdwg.mxu0
    %456 = vmatprep.subr.mxu0 %v267
    %457 = vmatpush1.msra.mxu0 %v266
    %458 = vmatprep.subr.mxu0 %v271
    %459 = vmatpush1.msra.mxu0 %v270
    %460 = vmatprep.subr.mxu0 %v275
    %461 = vmatpush1.msra.mxu0 %v274
    %462 = vmatprep.subr.mxu0 %v279
    %463 = vmatpush1.msra.mxu0 %v278
    %464 = vmatprep.subr.mxu0 %v283
    %465 = vmatpush1.msra.mxu0 %v282
    %466 = vmatprep.subr.mxu0 %v287
    %467 = vmatpush1.msra.mxu0 %v286
    %468 = vmatprep.subr.mxu0 %v291
    %469 = vmatpush1.msra.mxu0 %v290
    %470 = vmatprep.subr.mxu0 %v295
    %471 = vmatpush1.msra.mxu0 %v294
    %472 = vmatprep.subr.mxu0 0.0
    %473 = vmatpush1.msra.mxu0 0.0
    %474 = vmatprep.subr.mxu0 0.0
    %475 = vmatpush1.msra.mxu0 0.0
    %476 = vmatprep.subr.mxu0 0.0
    %477 = vmatpush1.msra.mxu0 0.0
    %478 = vmatprep.subr.mxu0 0.0
    %479 = vmatpush1.msra.mxu0 0.0
    %480 = vmatprep.subr.mxu0 0.0
    %481 = vmatpush1.msra.mxu0 0.0
    %482 = vmatprep.subr.mxu0 0.0
    %483 = vmatpush1.msra.mxu0 0.0
    %484 = vmatprep.subr.mxu0 0.0
    %485 = vmatpush1.msra.mxu0 0.0
    %486 = vmatprep.subr.mxu0 0.0
    %487 = vmatpush1.msra.mxu0 0.0
    %488 = vmatprep.subr.mxu0 0.0
    %489 = vmatpush1.msra.mxu0 0.0
    %490 = vmatprep.subr.mxu0 0.0
    %491 = vmatpush1.msra.mxu0 0.0
    %492 = vmatprep.subr.mxu0 0.0
    %493 = vmatpush1.msra.mxu0 0.0
    %494 = vmatprep.subr.mxu0 0.0
    %495 = vmatpush1.msra.mxu0 0.0
    %496 = vmatprep.subr.mxu0 0.0
    %497 = vmatpush1.msra.mxu0 0.0
    %498 = vmatprep.subr.mxu0 0.0
    %499 = vmatpush1.msra.mxu0 0.0
    %500 = vmatprep.subr.mxu0 0.0
    %501 = vmatpush1.msra.mxu0 0.0
    %502 = vmatprep.subr.mxu0 0.0
    %503 = vmatpush1.msra.mxu0 0.0
    %504 = vmatprep.subr.mxu0 0.0
    %505 = vmatpush1.msra.mxu0 0.0
    %506 = vmatprep.subr.mxu0 0.0
    %507 = vmatpush1.msra.mxu0 0.0
    %508 = vmatprep.subr.mxu0 0.0
    %509 = vmatpush1.msra.mxu0 0.0
    %510 = vmatprep.subr.mxu0 0.0
    %511 = vmatpush1.msra.mxu0 0.0
    %512 = vmatprep.subr.mxu0 0.0
    %513 = vmatpush1.msra.mxu0 0.0
    %514 = vmatprep.subr.mxu0 0.0
    %515 = vmatpush1.msra.mxu0 0.0
    %516 = vmatprep.subr.mxu0 0.0
    %517 = vmatpush1.msra.mxu0 0.0
    %518 = vmatprep.subr.mxu0 0.0
    %519 = vmatpush1.msra.mxu0 0.0
    %520 = vmatprep.mubr.f32.mxu0 0.0
    %521 = vmatmul.mubr.f32.gmra.mrb[0].mxu0 %v320
    %v522 = vpop.f32.mrb[0].mxu0
    %v523 = vadd.f32 %v309, %v522
    %v524 = vpop.f32.mrb[0].mxu0
    %v525 = vadd.f32 %v313, %v524
    %526 = vmatprep.mubr.f32.mxu0 0.0
    %527 = vmatmul.mubr.f32.gmra.mrb[0].mxu0 %v323
    %v528 = vpop.f32.mrb[0].mxu0
    %v529 = vadd.f32 %v309, %v528
    %v530 = vpop.f32.mrb[0].mxu0
    %v531 = vadd.f32 %v313, %v530
    %532 = vmatprep.mubr.f32.mxu0 0.0
    %533 = vmatmul.mubr.f32.gmra.mrb[0].mxu0 %v326
    %v534 = vpop.f32.mrb[0].mxu0
    %v535 = vadd.f32 %v309, %v534
    %v536 = vpop.f32.mrb[0].mxu0
    %v537 = vadd.f32 %v313, %v536
    %538 = vmatprep.mubr.f32.mxu0 0.0
    %539 = vmatmul.mubr.f32.gmra.mrb[0].mxu0 %v329
    %v540 = vpop.f32.mrb[0].mxu0
    %v541 = vadd.f32 %v309, %v540
    %v542 = vpop.f32.mrb[0].mxu0
    %v543 = vadd.f32 %v313, %v542
    %544 = vmatprep.mubr.f32.mxu0 0.0
    %545 = vmatmul.mubr.f32.gmra.mrb[0].mxu0 %v332
    %v546 = vpop.f32.mrb[0].mxu0
    %v547 = vadd.f32 %v309, %v546
    %v548 = vpop.f32.mrb[0].mxu0
    %v549 = vadd.f32 %v313, %v548
    %550 = vmatprep.mubr.f32.mxu0 0.0
    %551 = vmatmul.mubr.f32.gmra.mrb[0].mxu0 %v335
    %v552 = vpop.f32.mrb[0].mxu0
    %v553 = vadd.f32 %v309, %v552
    %v554 = vpop.f32.mrb[0].mxu0
    %v555 = vadd.f32 %v313, %v554
    %556 = vmatprep.mubr.f32.mxu0 0.0
    %557 = vmatmul.mubr.f32.gmra.mrb[0].mxu0 %v338
    %v558 = vpop.f32.mrb[0].mxu0
    %v559 = vadd.f32 %v309, %v558
    %v560 = vpop.f32.mrb[0].mxu0
    %v561 = vadd.f32 %v313, %v560
    %562 = vmatprep.mubr.f32.mxu0 0.0
    %563 = vmatmul.mubr.f32.gmra.mrb[0].mxu0 %v341
    %v564 = vpop.f32.mrb[0].mxu0
    %v565 = vadd.f32 %v309, %v564
    %v566 = vpop.f32.mrb[0].mxu0
    %v567 = vadd.f32 %v313, %v566
    %568 = vdwg.mxu0
    %v569 = vld [vmem:[%s4] sm:$0xff]
    %v570 = vld [vmem:[%s4 + $0x8] sm:$0xff]
    %v571 = vld [vmem:[%s4 + $0x10] sm:$0xff]
    %v572 = vld [vmem:[%s4 + $0x18] sm:$0xff]
    %v573 = vld [vmem:[%s4 + $0x20] sm:$0xff]
    %v574 = vld [vmem:[%s4 + $0x28] sm:$0xff]
    %v575 = vld [vmem:[%s4 + $0x30] sm:$0xff]
    %v576 = vld [vmem:[%s4 + $0x38] sm:$0xff]
    %v577 = vld [vmem:[%s4 + $0x40] sm:$0xff]
    %v578 = vld [vmem:[%s4 + $0x48] sm:$0xff]
    %v579 = vld [vmem:[%s4 + $0x50] sm:$0xff]
    %v580 = vld [vmem:[%s4 + $0x58] sm:$0xff]
    %v581 = vld [vmem:[%s4 + $0x60] sm:$0xff]
    %v582 = vld [vmem:[%s4 + $0x68] sm:$0xff]
    %v583 = vld [vmem:[%s4 + $0x70] sm:$0xff]
    %v584 = vld [vmem:[%s4 + $0x78] sm:$0xff]
    %v585 = vld [vmem:[%s4 + $0x80] sm:$0xff]
    %v586 = vld [vmem:[%s4 + $0x88] sm:$0xff]
    %v587 = vld [vmem:[%s4 + $0x90] sm:$0xff]
    %v588 = vld [vmem:[%s4 + $0x98] sm:$0xff]
    %v589 = vld [vmem:[%s4 + $0xa0] sm:$0xff]
    %v590 = vld [vmem:[%s4 + $0xa8] sm:$0xff]
    %v591 = vld [vmem:[%s4 + $0xb0] sm:$0xff]
    %v592 = vld [vmem:[%s4 + $0xb8] sm:$0xff]
    %v593 = vld [vmem:[%s4 + $0xc0] sm:$0xff]
    %v594 = vld [vmem:[%s4 + $0xc8] sm:$0xff]
    %v595 = vld [vmem:[%s4 + $0xd0] sm:$0xff]
    %v596 = vld [vmem:[%s4 + $0xd8] sm:$0xff]
    %v597 = vld [vmem:[%s4 + $0xe0] sm:$0xff]
    %v598 = vld [vmem:[%s4 + $0xe8] sm:$0xff]
    %v599 = vld [vmem:[%s4 + $0xf0] sm:$0xff]
    %v600 = vld [vmem:[%s4 + $0xf8] sm:$0xff]
    %v601 = vld [vmem:[%s4 + $0x100] sm:$0xff]
    %v602 = vld [vmem:[%s4 + $0x108] sm:$0xff]
    %v603 = vld [vmem:[%s4 + $0x110] sm:$0xff]
    %v604 = vld [vmem:[%s4 + $0x118] sm:$0xff]
    %v605 = vld [vmem:[%s4 + $0x120] sm:$0xff]
    %v606 = vld [vmem:[%s4 + $0x128] sm:$0xff]
    %v607 = vld [vmem:[%s4 + $0x130] sm:$0xff]
    %v608 = vld [vmem:[%s4 + $0x138] sm:$0xff]
    %v609 = vld [vmem:[%s4 + $0x140] sm:$0xff]
    %v610 = vld [vmem:[%s4 + $0x148] sm:$0xff]
    %v611 = vld [vmem:[%s4 + $0x150] sm:$0xff]
    %v612 = vld [vmem:[%s4 + $0x158] sm:$0xff]
    %v613 = vld [vmem:[%s4 + $0x160] sm:$0xff]
    %v614 = vld [vmem:[%s4 + $0x168] sm:$0xff]
    %v615 = vld [vmem:[%s4 + $0x170] sm:$0xff]
    %v616 = vld [vmem:[%s4 + $0x178] sm:$0xff]
    %v617 = vld [vmem:[%s4 + $0x180] sm:$0xff]
    %v618 = vld [vmem:[%s4 + $0x188] sm:$0xff]
    %v619 = vld [vmem:[%s4 + $0x190] sm:$0xff]
    %v620 = vld [vmem:[%s4 + $0x198] sm:$0xff]
    %v621 = vld [vmem:[%s4 + $0x1a0] sm:$0xff]
    %v622 = vld [vmem:[%s4 + $0x1a8] sm:$0xff]
    %v623 = vld [vmem:[%s4 + $0x1b0] sm:$0xff]
    %v624 = vld [vmem:[%s4 + $0x1b8] sm:$0xff]
    %v625 = vld [vmem:[%s4 + $0x1c0] sm:$0xff]
    %v626 = vld [vmem:[%s4 + $0x1c8] sm:$0xff]
    %v627 = vld [vmem:[%s4 + $0x1d0] sm:$0xff]
    %v628 = vld [vmem:[%s4 + $0x1d8] sm:$0xff]
    %v629 = vld [vmem:[%s4 + $0x1e0] sm:$0xff]
    %v630 = vld [vmem:[%s4 + $0x1e8] sm:$0xff]
    %v631 = vld [vmem:[%s4 + $0x1f0] sm:$0xff]
    %v632 = vld [vmem:[%s4 + $0x1f8] sm:$0xff]
    %633 = vmatprep.subr.mxu0 %v570
    %634 = vmatpush1.msra.mxu0 %v569
    %635 = vmatprep.subr.mxu0 %v574
    %636 = vmatpush1.msra.mxu0 %v573
    %637 = vmatprep.subr.mxu0 %v578
    %638 = vmatpush1.msra.mxu0 %v577
    %639 = vmatprep.subr.mxu0 %v582
    %640 = vmatpush1.msra.mxu0 %v581
    %641 = vmatprep.subr.mxu0 %v586
    %642 = vmatpush1.msra.mxu0 %v585
    %643 = vmatprep.subr.mxu0 %v590
    %644 = vmatpush1.msra.mxu0 %v589
    %645 = vmatprep.subr.mxu0 %v594
    %646 = vmatpush1.msra.mxu0 %v593
    %647 = vmatprep.subr.mxu0 %v598
    %648 = vmatpush1.msra.mxu0 %v597
    %649 = vmatprep.subr.mxu0 %v602
    %650 = vmatpush1.msra.mxu0 %v601
    %651 = vmatprep.subr.mxu0 %v606
    %652 = vmatpush1.msra.mxu0 %v605
    %653 = vmatprep.subr.mxu0 %v610
    %654 = vmatpush1.msra.mxu0 %v609
    %655 = vmatprep.subr.mxu0 %v614
    %656 = vmatpush1.msra.mxu0 %v613
    %657 = vmatprep.subr.mxu0 %v618
    %658 = vmatpush1.msra.mxu0 %v617
    %659 = vmatprep.subr.mxu0 %v622
    %660 = vmatpush1.msra.mxu0 %v621
    %661 = vmatprep.subr.mxu0 %v626
    %662 = vmatpush1.msra.mxu0 %v625
    %663 = vmatprep.subr.mxu0 %v630
    %664 = vmatpush1.msra.mxu0 %v629
    %665 = vmatprep.subr.mxu0 0.0
    %666 = vmatpush1.msra.mxu0 0.0
    %667 = vmatprep.subr.mxu0 0.0
    %668 = vmatpush1.msra.mxu0 0.0
    %669 = vmatprep.subr.mxu0 0.0
    %670 = vmatpush1.msra.mxu0 0.0
    %671 = vmatprep.subr.mxu0 0.0
    %672 = vmatpush1.msra.mxu0 0.0
    %673 = vmatprep.subr.mxu0 0.0
    %674 = vmatpush1.msra.mxu0 0.0
    %675 = vmatprep.subr.mxu0 0.0
    %676 = vmatpush1.msra.mxu0 0.0
    %677 = vmatprep.subr.mxu0 0.0
    %678 = vmatpush1.msra.mxu0 0.0
    %679 = vmatprep.subr.mxu0 0.0
    %680 = vmatpush1.msra.mxu0 0.0
    %681 = vmatprep.subr.mxu0 0.0
    %682 = vmatpush1.msra.mxu0 0.0
    %683 = vmatprep.subr.mxu0 0.0
    %684 = vmatpush1.msra.mxu0 0.0
    %685 = vmatprep.subr.mxu0 0.0
    %686 = vmatpush1.msra.mxu0 0.0
    %687 = vmatprep.subr.mxu0 0.0
    %688 = vmatpush1.msra.mxu0 0.0
    %689 = vmatprep.subr.mxu0 0.0
    %690 = vmatpush1.msra.mxu0 0.0
    %691 = vmatprep.subr.mxu0 0.0
    %692 = vmatpush1.msra.mxu0 0.0
    %693 = vmatprep.subr.mxu0 0.0
    %694 = vmatpush1.msra.mxu0 0.0
    %695 = vmatprep.subr.mxu0 0.0
    %696 = vmatpush1.msra.mxu0 0.0
    %697 = vmatprep.mubr.f32.mxu0 0.0
    %698 = vmatmul.mubr.f32.gmra.mrb[0].mxu0 0.0
    %v699 = vpop.f32.mrb[0].mxu0
    %v700 = vadd.f32 0.0, %v699
    %v701 = vpop.f32.mrb[0].mxu0
    %v702 = vadd.f32 0.0, %v701
    %703 = vdwg.mxu0
    %704 = vmatprep.subr.mxu0 %v572
    %705 = vmatpush1.msra.mxu0 %v571
    %706 = vmatprep.subr.mxu0 %v576
    %707 = vmatpush1.msra.mxu0 %v575
    %708 = vmatprep.subr.mxu0 %v580
    %709 = vmatpush1.msra.mxu0 %v579
    %710 = vmatprep.subr.mxu0 %v584
    %711 = vmatpush1.msra.mxu0 %v583
    %712 = vmatprep.subr.mxu0 %v588
    %713 = vmatpush1.msra.mxu0 %v587
    %714 = vmatprep.subr.mxu0 %v592
    %715 = vmatpush1.msra.mxu0 %v591
    %716 = vmatprep.subr.mxu0 %v596
    %717 = vmatpush1.msra.mxu0 %v595
    %718 = vmatprep.subr.mxu0 %v600
    %719 = vmatpush1.msra.mxu0 %v599
    %720 = vmatprep.subr.mxu0 %v604
    %721 = vmatpush1.msra.mxu0 %v603
    %722 = vmatprep.subr.mxu0 %v608
    %723 = vmatpush1.msra.mxu0 %v607
    %724 = vmatprep.subr.mxu0 %v612
    %725 = vmatpush1.msra.mxu0 %v611
    %726 = vmatprep.subr.mxu0 %v616
    %727 = vmatpush1.msra.mxu0 %v615
    %728 = vmatprep.subr.mxu0 %v620
    %729 = vmatpush1.msra.mxu0 %v619
    %730 = vmatprep.subr.mxu0 %v624
    %731 = vmatpush1.msra.mxu0 %v623
    %732 = vmatprep.subr.mxu0 %v628
    %733 = vmatpush1.msra.mxu0 %v627
    %734 = vmatprep.subr.mxu0 %v632
    %735 = vmatpush1.msra.mxu0 %v631
    %736 = vmatprep.subr.mxu0 0.0
    %737 = vmatpush1.msra.mxu0 0.0
    %738 = vmatprep.subr.mxu0 0.0
    %739 = vmatpush1.msra.mxu0 0.0
    %740 = vmatprep.subr.mxu0 0.0
    %741 = vmatpush1.msra.mxu0 0.0
    %742 = vmatprep.subr.mxu0 0.0
    %743 = vmatpush1.msra.mxu0 0.0
    %744 = vmatprep.subr.mxu0 0.0
    %745 = vmatpush1.msra.mxu0 0.0
    %746 = vmatprep.subr.mxu0 0.0
    %747 = vmatpush1.msra.mxu0 0.0
    %748 = vmatprep.subr.mxu0 0.0
    %749 = vmatpush1.msra.mxu0 0.0
    %750 = vmatprep.subr.mxu0 0.0
    %751 = vmatpush1.msra.mxu0 0.0
    %752 = vmatprep.subr.mxu0 0.0
    %753 = vmatpush1.msra.mxu0 0.0
    %754 = vmatprep.subr.mxu0 0.0
    %755 = vmatpush1.msra.mxu0 0.0
    %756 = vmatprep.subr.mxu0 0.0
    %757 = vmatpush1.msra.mxu0 0.0
    %758 = vmatprep.subr.mxu0 0.0
    %759 = vmatpush1.msra.mxu0 0.0
    %760 = vmatprep.subr.mxu0 0.0
    %761 = vmatpush1.msra.mxu0 0.0
    %762 = vmatprep.subr.mxu0 0.0
    %763 = vmatpush1.msra.mxu0 0.0
    %764 = vmatprep.subr.mxu0 0.0
    %765 = vmatpush1.msra.mxu0 0.0
    %766 = vmatprep.subr.mxu0 0.0
    %767 = vmatpush1.msra.mxu0 0.0
    %768 = vmatprep.mubr.f32.mxu0 0.0
    %769 = vmatmul.mubr.f32.gmra.mrb[0].mxu0 0.0
    %v770 = vpop.f32.mrb[0].mxu0
    %v771 = vadd.f32 0.0, %v770
    %v772 = vpop.f32.mrb[0].mxu0
    %v773 = vadd.f32 0.0, %v772
    %774 = vdwg.mxu0
    %v775 = vadd.f32 %v410, %v700
    %v776 = vadd.f32 %v412, %v702
    %v777 = vadd.f32 %v523, %v771
    %v778 = vadd.f32 %v525, %v773
    %v779 = vmul.f32 %v775, 0.5
    %v780 = vtanh.pop %v779
    %v781 = vadd.f32 %v780, 1.0
    %v782 = vmul.f32 %v781, 0.5
    %v783 = vmul.f32 %v776, 0.5
    %v784 = vtanh.pop %v783
    %v785 = vadd.f32 %v784, 1.0
    %v786 = vmul.f32 %v785, 0.5
    %v787 = vtanh.pop %v777
    %v788 = vmul.f32 %v778, 0.5
    %v789 = vtanh.pop %v788
    %v790 = vadd.f32 %v789, 1.0
    %v791 = vmul.f32 %v790, 0.5
    %v792 = vmul.f32 %v786, 0.0
    %v793 = vmul.f32 %v782, %v787
    %v794 = vadd.f32 %v792, %v793
    %v795 = vtanh.pop %v794
    %v796 = vmul.f32 %v791, %v795
    %797 = vmatprep.subr.mxu0 %v570
    %798 = vmatpush1.msra.mxu0 %v569
    %799 = vmatprep.subr.mxu0 %v574
    %800 = vmatpush1.msra.mxu0 %v573
    %801 = vmatprep.subr.mxu0 %v578
    %802 = vmatpush1.msra.mxu0 %v577
    %803 = vmatprep.subr.mxu0 %v582
    %804 = vmatpush1.msra.mxu0 %v581
    %805 = vmatprep.subr.mxu0 %v586
    %806 = vmatpush1.msra.mxu0 %v585
    %807 = vmatprep.subr.mxu0 %v590
    %808 = vmatpush1.msra.mxu0 %v589
    %809 = vmatprep.subr.mxu0 %v594
    %810 = vmatpush1.msra.mxu0 %v593
    %811 = vmatprep.subr.mxu0 %v598
    %812 = vmatpush1.msra.mxu0 %v597
    %813 = vmatprep.subr.mxu0 %v602
    %814 = vmatpush1.msra.mxu0 %v601
    %815 = vmatprep.subr.mxu0 %v606
    %816 = vmatpush1.msra.mxu0 %v605
    %817 = vmatprep.subr.mxu0 %v610
    %818 = vmatpush1.msra.mxu0 %v609
    %819 = vmatprep.subr.mxu0 %v614
    %820 = vmatpush1.msra.mxu0 %v613
    %821 = vmatprep.subr.mxu0 %v618
    %822 = vmatpush1.msra.mxu0 %v617
    %823 = vmatprep.subr.mxu0 %v622
    %824 = vmatpush1.msra.mxu0 %v621
    %825 = vmatprep.subr.mxu0 %v626
    %826 = vmatpush1.msra.mxu0 %v625
    %827 = vmatprep.subr.mxu0 %v630
    %828 = vmatpush1.msra.mxu0 %v629
    %829 = vmatprep.subr.mxu0 0.0
    %830 = vmatpush1.msra.mxu0 0.0
    %831 = vmatprep.subr.mxu0 0.0
    %832 = vmatpush1.msra.mxu0 0.0
    %833 = vmatprep.subr.mxu0 0.0
    %834 = vmatpush1.msra.mxu0 0.0
    %835 = vmatprep.subr.mxu0 0.0
    %836 = vmatpush1.msra.mxu0 0.0
    %837 = vmatprep.subr.mxu0 0.0
    %838 = vmatpush1.msra.mxu0 0.0
    %839 = vmatprep.subr.mxu0 0.0
    %840 = vmatpush1.msra.mxu0 0.0
    %841 = vmatprep.subr.mxu0 0.0
    %842 = vmatpush1.msra.mxu0 0.0
    %843 = vmatprep.subr.mxu0 0.0
    %844 = vmatpush1.msra.mxu0 0.0
    %845 = vmatprep.subr.mxu0 0.0
    %846 = vmatpush1.msra.mxu0 0.0
    %847 = vmatprep.subr.mxu0 0.0
    %848 = vmatpush1.msra.mxu0 0.0
    %849 = vmatprep.subr.mxu0 0.0
    %850 = vmatpush1.msra.mxu0 0.0
    %851 = vmatprep.subr.mxu0 0.0
    %852 = vmatpush1.msra.mxu0 0.0
    %853 = vmatprep.subr.mxu0 0.0
    %854 = vmatpush1.msra.mxu0 0.0
    %855 = vmatprep.subr.mxu0 0.0
    %856 = vmatpush1.msra.mxu0 0.0
    %857 = vmatprep.subr.mxu0 0.0
    %858 = vmatpush1.msra.mxu0 0.0
    %859 = vmatprep.subr.mxu0 0.0
    %860 = vmatpush1.msra.mxu0 0.0
    %861 = vmatprep.mubr.f32.mxu0 0.0
    %862 = vmatmul.mubr.f32.gmra.mrb[0].mxu0 %v796
    %v863 = vpop.f32.mrb[0].mxu0
    %v864 = vadd.f32 0.0, %v863
    %v865 = vpop.f32.mrb[0].mxu0
    %v866 = vadd.f32 0.0, %v865
    %867 = vdwg.mxu0
    %868 = vmatprep.subr.mxu0 %v572
    %869 = vmatpush1.msra.mxu0 %v571
    %870 = vmatprep.subr.mxu0 %v576
    %871 = vmatpush1.msra.mxu0 %v575
    %872 = vmatprep.subr.mxu0 %v580
    %873 = vmatpush1.msra.mxu0 %v579
    %874 = vmatprep.subr.mxu0 %v584
    %875 = vmatpush1.msra.mxu0 %v583
    %876 = vmatprep.subr.mxu0 %v588
    %877 = vmatpush1.msra.mxu0 %v587
    %878 = vmatprep.subr.mxu0 %v592
    %879 = vmatpush1.msra.mxu0 %v591
    %880 = vmatprep.subr.mxu0 %v596
    %881 = vmatpush1.msra.mxu0 %v595
    %882 = vmatprep.subr.mxu0 %v600
    %883 = vmatpush1.msra.mxu0 %v599
    %884 = vmatprep.subr.mxu0 %v604
    %885 = vmatpush1.msra.mxu0 %v603
    %886 = vmatprep.subr.mxu0 %v608
    %887 = vmatpush1.msra.mxu0 %v607
    %888 = vmatprep.subr.mxu0 %v612
    %889 = vmatpush1.msra.mxu0 %v611
    %890 = vmatprep.subr.mxu0 %v616
    %891 = vmatpush1.msra.mxu0 %v615
    %892 = vmatprep.subr.mxu0 %v620
    %893 = vmatpush1.msra.mxu0 %v619
    %894 = vmatprep.subr.mxu0 %v624
    %895 = vmatpush1.msra.mxu0 %v623
    %896 = vmatprep.subr.mxu0 %v628
    %897 = vmatpush1.msra.mxu0 %v627
    %898 = vmatprep.subr.mxu0 %v632
    %899 = vmatpush1.msra.mxu0 %v631
    %900 = vmatprep.subr.mxu0 0.0
    %901 = vmatpush1.msra.mxu0 0.0
    %902 = vmatprep.subr.mxu0 0.0
    %903 = vmatpush1.msra.mxu0 0.0
    %904 = vmatprep.subr.mxu0 0.0
    %905 = vmatpush1.msra.mxu0 0.0
    %906 = vmatprep.subr.mxu0 0.0
    %907 = vmatpush1.msra.mxu0 0.0
    %908 = vmatprep.subr.mxu0 0.0
    %909 = vmatpush1.msra.mxu0 0.0
    %910 = vmatprep.subr.mxu0 0.0
    %911 = vmatpush1.msra.mxu0 0.0
    %912 = vmatprep.subr.mxu0 0.0
    %913 = vmatpush1.msra.mxu0 0.0
    %914 = vmatprep.subr.mxu0 0.0
    %915 = vmatpush1.msra.mxu0 0.0
    %916 = vmatprep.subr.mxu0 0.0
    %917 = vmatpush1.msra.mxu0 0.0
    %918 = vmatprep.subr.mxu0 0.0
    %919 = vmatpush1.msra.mxu0 0.0
    %920 = vmatprep.subr.mxu0 0.0
    %921 = vmatpush1.msra.mxu0 0.0
    %922 = vmatprep.subr.mxu0 0.0
    %923 = vmatpush1.msra.mxu0 0.0
    %924 = vmatprep.subr.mxu0 0.0
    %925 = vmatpush1.msra.mxu0 0.0
    %926 = vmatprep.subr.mxu0 0.0
    %927 = vmatpush1.msra.mxu0 0.0
    %928 = vmatprep.subr.mxu0 0.0
    %929 = vmatpush1.msra.mxu0 0.0
    %930 = vmatprep.subr.mxu0 0.0
    %931 = vmatpush1.msra.mxu0 0.0
    %932 = vmatprep.mubr.f32.mxu0 0.0
    %933 = vmatmul.mubr.f32.gmra.mrb[0].mxu0 %v796
    %v934 = vpop.f32.mrb[0].mxu0
    %v935 = vadd.f32 0.0, %v934
    %v936 = vpop.f32.mrb[0].mxu0
    %v937 = vadd.f32 0.0, %v936
    %938 = vdwg.mxu0
    %v939 = vadd.f32 %v416, %v864
    %v940 = vadd.f32 %v418, %v866
    %v941 = vadd.f32 %v529, %v935
    %v942 = vadd.f32 %v531, %v937
    %v943 = vmul.f32 %v939, 0.5
    %v944 = vtanh.pop %v943
    %v945 = vadd.f32 %v944, 1.0
    %v946 = vmul.f32 %v945, 0.5
    %v947 = vmul.f32 %v940, 0.5
    %v948 = vtanh.pop %v947
    %v949 = vadd.f32 %v948, 1.0
    %v950 = vmul.f32 %v949, 0.5
    %v951 = vtanh.pop %v941
    %v952 = vmul.f32 %v942, 0.5
    %v953 = vtanh.pop %v952
    %v954 = vadd.f32 %v953, 1.0
    %v955 = vmul.f32 %v954, 0.5
    %v956 = vmul.f32 %v950, %v794
    %v957 = vmul.f32 %v946, %v951
    %v958 = vadd.f32 %v956, %v957
    %v959 = vtanh.pop %v958
    %v960 = vmul.f32 %v955, %v959
    %961 = vmatprep.subr.mxu0 %v570
    %962 = vmatpush1.msra.mxu0 %v569
    %963 = vmatprep.subr.mxu0 %v574
    %964 = vmatpush1.msra.mxu0 %v573
    %965 = vmatprep.subr.mxu0 %v578
    %966 = vmatpush1.msra.mxu0 %v577
    %967 = vmatprep.subr.mxu0 %v582
    %968 = vmatpush1.msra.mxu0 %v581
    %969 = vmatprep.subr.mxu0 %v586
    %970 = vmatpush1.msra.mxu0 %v585
    %971 = vmatprep.subr.mxu0 %v590
    %972 = vmatpush1.msra.mxu0 %v589
    %973 = vmatprep.subr.mxu0 %v594
    %974 = vmatpush1.msra.mxu0 %v593
    %975 = vmatprep.subr.mxu0 %v598
    %976 = vmatpush1.msra.mxu0 %v597
    %977 = vmatprep.subr.mxu0 %v602
    %978 = vmatpush1.msra.mxu0 %v601
    %979 = vmatprep.subr.mxu0 %v606
    %980 = vmatpush1.msra.mxu0 %v605
    %981 = vmatprep.subr.mxu0 %v610
    %982 = vmatpush1.msra.mxu0 %v609
    %983 = vmatprep.subr.mxu0 %v614
    %984 = vmatpush1.msra.mxu0 %v613
    %985 = vmatprep.subr.mxu0 %v618
    %986 = vmatpush1.msra.mxu0 %v617
    %987 = vmatprep.subr.mxu0 %v622
    %988 = vmatpush1.msra.mxu0 %v621
    %989 = vmatprep.subr.mxu0 %v626
    %990 = vmatpush1.msra.mxu0 %v625
    %991 = vmatprep.subr.mxu0 %v630
    %992 = vmatpush1.msra.mxu0 %v629
    %993 = vmatprep.subr.mxu0 0.0
    %994 = vmatpush1.msra.mxu0 0.0
    %995 = vmatprep.subr.mxu0 0.0
    %996 = vmatpush1.msra.mxu0 0.0
    %997 = vmatprep.subr.mxu0 0.0
    %998 = vmatpush1.msra.mxu0 0.0
    %999 = vmatprep.subr.mxu0 0.0
    %1000 = vmatpush1.msra.mxu0 0.0
    %1001 = vmatprep.subr.mxu0 0.0
    %1002 = vmatpush1.msra.mxu0 0.0
    %1003 = vmatprep.subr.mxu0 0.0
    %1004 = vmatpush1.msra.mxu0 0.0
    %1005 = vmatprep.subr.mxu0 0.0
    %1006 = vmatpush1.msra.mxu0 0.0
    %1007 = vmatprep.subr.mxu0 0.0
    %1008 = vmatpush1.msra.mxu0 0.0
    %1009 = vmatprep.subr.mxu0 0.0
    %1010 = vmatpush1.msra.mxu0 0.0
    %1011 = vmatprep.subr.mxu0 0.0
    %1012 = vmatpush1.msra.mxu0 0.0
    %1013 = vmatprep.subr.mxu0 0.0
    %1014 = vmatpush1.msra.mxu0 0.0
    %1015 = vmatprep.subr.mxu0 0.0
    %1016 = vmatpush1.msra.mxu0 0.0
    %1017 = vmatprep.subr.mxu0 0.0
    %1018 = vmatpush1.msra.mxu0 0.0
    %1019 = vmatprep.subr.mxu0 0.0
    %1020 = vmatpush1.msra.mxu0 0.0
    %1021 = vmatprep.subr.mxu0 0.0
    %1022 = vmatpush1.msra.mxu0 0.0
    %1023 = vmatprep.subr.mxu0 0.0
    %1024 = vmatpush1.msra.mxu0 0.0
    %1025 = vmatprep.mubr.f32.mxu0 0.0
    %1026 = vmatmul.mubr.f32.gmra.mrb[0].mxu0 %v960
    %v1027 = vpop.f32.mrb[0].mxu0
    %v1028 = vadd.f32 0.0, %v1027
    %v1029 = vpop.f32.mrb[0].mxu0
    %v1030 = vadd.f32 0.0, %v1029
    %1031 = vdwg.mxu0
    %1032 = vmatprep.subr.mxu0 %v572
    %1033 = vmatpush1.msra.mxu0 %v571
    %1034 = vmatprep.subr.mxu0 %v576
    %1035 = vmatpush1.msra.mxu0 %v575
    %1036 = vmatprep.subr.mxu0 %v580
    %1037 = vmatpush1.msra.mxu0 %v579
    %1038 = vmatprep.subr.mxu0 %v584
    %1039 = vmatpush1.msra.mxu0 %v583
    %1040 = vmatprep.subr.mxu0 %v588
    %1041 = vmatpush1.msra.mxu0 %v587
    %1042 = vmatprep.subr.mxu0 %v592
    %1043 = vmatpush1.msra.mxu0 %v591
    %1044 = vmatprep.subr.mxu0 %v596
    %1045 = vmatpush1.msra.mxu0 %v595
    %1046 = vmatprep.subr.mxu0 %v600
    %1047 = vmatpush1.msra.mxu0 %v599
    %1048 = vmatprep.subr.mxu0 %v604
    %1049 = vmatpush1.msra.mxu0 %v603
    %1050 = vmatprep.subr.mxu0 %v608
    %1051 = vmatpush1.msra.mxu0 %v607
    %1052 = vmatprep.subr.mxu0 %v612
    %1053 = vmatpush1.msra.mxu0 %v611
    %1054 = vmatprep.subr.mxu0 %v616
    %1055 = vmatpush1.msra.mxu0 %v615
    %1056 = vmatprep.subr.mxu0 %v620
    %1057 = vmatpush1.msra.mxu0 %v619
    %1058 = vmatprep.subr.mxu0 %v624
    %1059 = vmatpush1.msra.mxu0 %v623
    %1060 = vmatprep.subr.mxu0 %v628
    %1061 = vmatpush1.msra.mxu0 %v627
    %1062 = vmatprep.subr.mxu0 %v632
    %1063 = vmatpush1.msra.mxu0 %v631
    %1064 = vmatprep.subr.mxu0 0.0
    %1065 = vmatpush1.msra.mxu0 0.0
    %1066 = vmatprep.subr.mxu0 0.0
    %1067 = vmatpush1.msra.mxu0 0.0
    %1068 = vmatprep.subr.mxu0 0.0
    %1069 = vmatpush1.msra.mxu0 0.0
    %1070 = vmatprep.subr.mxu0 0.0
    %1071 = vmatpush1.msra.mxu0 0.0
    %1072 = vmatprep.subr.mxu0 0.0
    %1073 = vmatpush1.msra.mxu0 0.0
    %1074 = vmatprep.subr.mxu0 0.0
    %1075 = vmatpush1.msra.mxu0 0.0
    %1076 = vmatprep.subr.mxu0 0.0
    %1077 = vmatpush1.msra.mxu0 0.0
    %1078 = vmatprep.subr.mxu0 0.0
    %1079 = vmatpush1.msra.mxu0 0.0
    %1080 = vmatprep.subr.mxu0 0.0
    %1081 = vmatpush1.msra.mxu0 0.0
    %1082 = vmatprep.subr.mxu0 0.0
    %1083 = vmatpush1.msra.mxu0 0.0
    %1084 = vmatprep.subr.mxu0 0.0
    %1085 = vmatpush1.msra.mxu0 0.0
    %1086 = vmatprep.subr.mxu0 0.0
    %1087 = vmatpush1.msra.mxu0 0.0
    %1088 = vmatprep.subr.mxu0 0.0
    %1089 = vmatpush1.msra.mxu0 0.0
    %1090 = vmatprep.subr.mxu0 0.0
    %1091 = vmatpush1.msra.mxu0 0.0
    %1092 = vmatprep.subr.mxu0 0.0
    %1093 = vmatpush1.msra.mxu0 0.0
    %1094 = vmatprep.subr.mxu0 0.0
    %1095 = vmatpush1.msra.mxu0 0.0
    %1096 = vmatprep.mubr.f32.mxu0 0.0
    %1097 = vmatmul.mubr.f32.gmra.mrb[0].mxu0 %v960
    %v1098 = vpop.f32.mrb[0].mxu0
    %v1099 = vadd.f32 0.0, %v1098
    %v1100 = vpop.f32.mrb[0].mxu0
    %v1101 = vadd.f32 0.0, %v1100
    %1102 = vdwg.mxu0
    %v1103 = vadd.f32 %v422, %v1028
    %v1104 = vadd.f32 %v424, %v1030
    %v1105 = vadd.f32 %v535, %v1099
    %v1106 = vadd.f32 %v537, %v1101
    %v1107 = vmul.f32 %v1103, 0.5
    %v1108 = vtanh.pop %v1107
    %v1109 = vadd.f32 %v1108, 1.0
    %v1110 = vmul.f32 %v1109, 0.5
    %v1111 = vmul.f32 %v1104, 0.5
    %v1112 = vtanh.pop %v1111
    %v1113 = vadd.f32 %v1112, 1.0
    %v1114 = vmul.f32 %v1113, 0.5
    %v1115 = vtanh.pop %v1105
    %v1116 = vmul.f32 %v1106, 0.5
    %v1117 = vtanh.pop %v1116
    %v1118 = vadd.f32 %v1117, 1.0
    %v1119 = vmul.f32 %v1118, 0.5
    %v1120 = vmul.f32 %v1114, %v958
    %v1121 = vmul.f32 %v1110, %v1115
    %v1122 = vadd.f32 %v1120, %v1121
    %v1123 = vtanh.pop %v1122
    %v1124 = vmul.f32 %v1119, %v1123
    %1125 = vmatprep.subr.mxu0 %v570
    %1126 = vmatpush1.msra.mxu0 %v569
    %1127 = vmatprep.subr.mxu0 %v574
    %1128 = vmatpush1.msra.mxu0 %v573
    %1129 = vmatprep.subr.mxu0 %v578
    %1130 = vmatpush1.msra.mxu0 %v577
    %1131 = vmatprep.subr.mxu0 %v582
    %1132 = vmatpush1.msra.mxu0 %v581
    %1133 = vmatprep.subr.mxu0 %v586
    %1134 = vmatpush1.msra.mxu0 %v585
    %1135 = vmatprep.subr.mxu0 %v590
    %1136 = vmatpush1.msra.mxu0 %v589
    %1137 = vmatprep.subr.mxu0 %v594
    %1138 = vmatpush1.msra.mxu0 %v593
    %1139 = vmatprep.subr.mxu0 %v598
    %1140 = vmatpush1.msra.mxu0 %v597
    %1141 = vmatprep.subr.mxu0 %v602
    %1142 = vmatpush1.msra.mxu0 %v601
    %1143 = vmatprep.subr.mxu0 %v606
    %1144 = vmatpush1.msra.mxu0 %v605
    %1145 = vmatprep.subr.mxu0 %v610
    %1146 = vmatpush1.msra.mxu0 %v609
    %1147 = vmatprep.subr.mxu0 %v614
    %1148 = vmatpush1.msra.mxu0 %v613
    %1149 = vmatprep.subr.mxu0 %v618
    %1150 = vmatpush1.msra.mxu0 %v617
    %1151 = vmatprep.subr.mxu0 %v622
    %1152 = vmatpush1.msra.mxu0 %v621
    %1153 = vmatprep.subr.mxu0 %v626
    %1154 = vmatpush1.msra.mxu0 %v625
    %1155 = vmatprep.subr.mxu0 %v630
    %1156 = vmatpush1.msra.mxu0 %v629
    %1157 = vmatprep.subr.mxu0 0.0
    %1158 = vmatpush1.msra.mxu0 0.0
    %1159 = vmatprep.subr.mxu0 0.0
    %1160 = vmatpush1.msra.mxu0 0.0
    %1161 = vmatprep.subr.mxu0 0.0
    %1162 = vmatpush1.msra.mxu0 0.0
    %1163 = vmatprep.subr.mxu0 0.0
    %1164 = vmatpush1.msra.mxu0 0.0
    %1165 = vmatprep.subr.mxu0 0.0
    %1166 = vmatpush1.msra.mxu0 0.0
    %1167 = vmatprep.subr.mxu0 0.0
    %1168 = vmatpush1.msra.mxu0 0.0
    %1169 = vmatprep.subr.mxu0 0.0
    %1170 = vmatpush1.msra.mxu0 0.0
    %1171 = vmatprep.subr.mxu0 0.0
    %1172 = vmatpush1.msra.mxu0 0.0
    %1173 = vmatprep.subr.mxu0 0.0
    %1174 = vmatpush1.msra.mxu0 0.0
    %1175 = vmatprep.subr.mxu0 0.0
    %1176 = vmatpush1.msra.mxu0 0.0
    %1177 = vmatprep.subr.mxu0 0.0
    %1178 = vmatpush1.msra.mxu0 0.0
    %1179 = vmatprep.subr.mxu0 0.0
    %1180 = vmatpush1.msra.mxu0 0.0
    %1181 = vmatprep.subr.mxu0 0.0
    %1182 = vmatpush1.msra.mxu0 0.0
    %1183 = vmatprep.subr.mxu0 0.0
    %1184 = vmatpush1.msra.mxu0 0.0
    %1185 = vmatprep.subr.mxu0 0.0
    %1186 = vmatpush1.msra.mxu0 0.0
    %1187 = vmatprep.subr.mxu0 0.0
    %1188 = vmatpush1.msra.mxu0 0.0
    %1189 = vmatprep.mubr.f32.mxu0 0.0
    %1190 = vmatmul.mubr.f32.gmra.mrb[0].mxu0 %v1124
    %v1191 = vpop.f32.mrb[0].mxu0
    %v1192 = vadd.f32 0.0, %v1191
    %v1193 = vpop.f32.mrb[0].mxu0
    %v1194 = vadd.f32 0.0, %v1193
    %1195 = vdwg.mxu0
    %1196 = vmatprep.subr.mxu0 %v572
    %1197 = vmatpush1.msra.mxu0 %v571
    %1198 = vmatprep.subr.mxu0 %v576
    %1199 = vmatpush1.msra.mxu0 %v575
    %1200 = vmatprep.subr.mxu0 %v580
    %1201 = vmatpush1.msra.mxu0 %v579
    %1202 = vmatprep.subr.mxu0 %v584
    %1203 = vmatpush1.msra.mxu0 %v583
    %1204 = vmatprep.subr.mxu0 %v588
    %1205 = vmatpush1.msra.mxu0 %v587
    %1206 = vmatprep.subr.mxu0 %v592
    %1207 = vmatpush1.msra.mxu0 %v591
    %1208 = vmatprep.subr.mxu0 %v596
    %1209 = vmatpush1.msra.mxu0 %v595
    %1210 = vmatprep.subr.mxu0 %v600
    %1211 = vmatpush1.msra.mxu0 %v599
    %1212 = vmatprep.subr.mxu0 %v604
    %1213 = vmatpush1.msra.mxu0 %v603
    %1214 = vmatprep.subr.mxu0 %v608
    %1215 = vmatpush1.msra.mxu0 %v607
    %1216 = vmatprep.subr.mxu0 %v612
    %1217 = vmatpush1.msra.mxu0 %v611
    %1218 = vmatprep.subr.mxu0 %v616
    %1219 = vmatpush1.msra.mxu0 %v615
    %1220 = vmatprep.subr.mxu0 %v620
    %1221 = vmatpush1.msra.mxu0 %v619
    %1222 = vmatprep.subr.mxu0 %v624
    %1223 = vmatpush1.msra.mxu0 %v623
    %1224 = vmatprep.subr.mxu0 %v628
    %1225 = vmatpush1.msra.mxu0 %v627
    %1226 = vmatprep.subr.mxu0 %v632
    %1227 = vmatpush1.msra.mxu0 %v631
    %1228 = vmatprep.subr.mxu0 0.0
    %1229 = vmatpush1.msra.mxu0 0.0
    %1230 = vmatprep.subr.mxu0 0.0
    %1231 = vmatpush1.msra.mxu0 0.0
    %1232 = vmatprep.subr.mxu0 0.0
    %1233 = vmatpush1.msra.mxu0 0.0
    %1234 = vmatprep.subr.mxu0 0.0
    %1235 = vmatpush1.msra.mxu0 0.0
    %1236 = vmatprep.subr.mxu0 0.0
    %1237 = vmatpush1.msra.mxu0 0.0
    %1238 = vmatprep.subr.mxu0 0.0
    %1239 = vmatpush1.msra.mxu0 0.0
    %1240 = vmatprep.subr.mxu0 0.0
    %1241 = vmatpush1.msra.mxu0 0.0
    %1242 = vmatprep.subr.mxu0 0.0
    %1243 = vmatpush1.msra.mxu0 0.0
    %1244 = vmatprep.subr.mxu0 0.0
    %1245 = vmatpush1.msra.mxu0 0.0
    %1246 = vmatprep.subr.mxu0 0.0
    %1247 = vmatpush1.msra.mxu0 0.0
    %1248 = vmatprep.subr.mxu0 0.0
    %1249 = vmatpush1.msra.mxu0 0.0
    %1250 = vmatprep.subr.mxu0 0.0
    %1251 = vmatpush1.msra.mxu0 0.0
    %1252 = vmatprep.subr.mxu0 0.0
    %1253 = vmatpush1.msra.mxu0 0.0
    %1254 = vmatprep.subr.mxu0 0.0
    %1255 = vmatpush1.msra.mxu0 0.0
    %1256 = vmatprep.subr.mxu0 0.0
    %1257 = vmatpush1.msra.mxu0 0.0
    %1258 = vmatprep.subr.mxu0 0.0
    %1259 = vmatpush1.msra.mxu0 0.0
    %1260 = vmatprep.mubr.f32.mxu0 0.0
    %1261 = vmatmul.mubr.f32.gmra.mrb[0].mxu0 %v1124
    %v1262 = vpop.f32.mrb[0].mxu0
    %v1263 = vadd.f32 0.0, %v1262
    %v1264 = vpop.f32.mrb[0].mxu0
    %v1265 = vadd.f32 0.0, %v1264
    %1266 = vdwg.mxu0
    %v1267 = vadd.f32 %v428, %v1192
    %v1268 = vadd.f32 %v430, %v1194
    %v1269 = vadd.f32 %v541, %v1263
    %v1270 = vadd.f32 %v543, %v1265
    %v1271 = vmul.f32 %v1267, 0.5
    %v1272 = vtanh.pop %v1271
    %v1273 = vadd.f32 %v1272, 1.0
    %v1274 = vmul.f32 %v1273, 0.5
    %v1275 = vmul.f32 %v1268, 0.5
    %v1276 = vtanh.pop %v1275
    %v1277 = vadd.f32 %v1276, 1.0
    %v1278 = vmul.f32 %v1277, 0.5
    %v1279 = vtanh.pop %v1269
    %v1280 = vmul.f32 %v1270, 0.5
    %v1281 = vtanh.pop %v1280
    %v1282 = vadd.f32 %v1281, 1.0
    %v1283 = vmul.f32 %v1282, 0.5
    %v1284 = vmul.f32 %v1278, %v1122
    %v1285 = vmul.f32 %v1274, %v1279
    %v1286 = vadd.f32 %v1284, %v1285
    %v1287 = vtanh.pop %v1286
    %v1288 = vmul.f32 %v1283, %v1287
    %1289 = vmatprep.subr.mxu0 %v570
    %1290 = vmatpush1.msra.mxu0 %v569
    %1291 = vmatprep.subr.mxu0 %v574
    %1292 = vmatpush1.msra.mxu0 %v573
    %1293 = vmatprep.subr.mxu0 %v578
    %1294 = vmatpush1.msra.mxu0 %v577
    %1295 = vmatprep.subr.mxu0 %v582
    %1296 = vmatpush1.msra.mxu0 %v581
    %1297 = vmatprep.subr.mxu0 %v586
    %1298 = vmatpush1.msra.mxu0 %v585
    %1299 = vmatprep.subr.mxu0 %v590
    %1300 = vmatpush1.msra.mxu0 %v589
    %1301 = vmatprep.subr.mxu0 %v594
    %1302 = vmatpush1.msra.mxu0 %v593
    %1303 = vmatprep.subr.mxu0 %v598
    %1304 = vmatpush1.msra.mxu0 %v597
    %1305 = vmatprep.subr.mxu0 %v602
    %1306 = vmatpush1.msra.mxu0 %v601
    %1307 = vmatprep.subr.mxu0 %v606
    %1308 = vmatpush1.msra.mxu0 %v605
    %1309 = vmatprep.subr.mxu0 %v610
    %1310 = vmatpush1.msra.mxu0 %v609
    %1311 = vmatprep.subr.mxu0 %v614
    %1312 = vmatpush1.msra.mxu0 %v613
    %1313 = vmatprep.subr.mxu0 %v618
    %1314 = vmatpush1.msra.mxu0 %v617
    %1315 = vmatprep.subr.mxu0 %v622
    %1316 = vmatpush1.msra.mxu0 %v621
    %1317 = vmatprep.subr.mxu0 %v626
    %1318 = vmatpush1.msra.mxu0 %v625
    %1319 = vmatprep.subr.mxu0 %v630
    %1320 = vmatpush1.msra.mxu0 %v629
    %1321 = vmatprep.subr.mxu0 0.0
    %1322 = vmatpush1.msra.mxu0 0.0
    %1323 = vmatprep.subr.mxu0 0.0
    %1324 = vmatpush1.msra.mxu0 0.0
    %1325 = vmatprep.subr.mxu0 0.0
    %1326 = vmatpush1.msra.mxu0 0.0
    %1327 = vmatprep.subr.mxu0 0.0
    %1328 = vmatpush1.msra.mxu0 0.0
    %1329 = vmatprep.subr.mxu0 0.0
    %1330 = vmatpush1.msra.mxu0 0.0
    %1331 = vmatprep.subr.mxu0 0.0
    %1332 = vmatpush1.msra.mxu0 0.0
    %1333 = vmatprep.subr.mxu0 0.0
    %1334 = vmatpush1.msra.mxu0 0.0
    %1335 = vmatprep.subr.mxu0 0.0
    %1336 = vmatpush1.msra.mxu0 0.0
    %1337 = vmatprep.subr.mxu0 0.0
    %1338 = vmatpush1.msra.mxu0 0.0
    %1339 = vmatprep.subr.mxu0 0.0
    %1340 = vmatpush1.msra.mxu0 0.0
    %1341 = vmatprep.subr.mxu0 0.0
    %1342 = vmatpush1.msra.mxu0 0.0
    %1343 = vmatprep.subr.mxu0 0.0
    %1344 = vmatpush1.msra.mxu0 0.0
    %1345 = vmatprep.subr.mxu0 0.0
    %1346 = vmatpush1.msra.mxu0 0.0
    %1347 = vmatprep.subr.mxu0 0.0
    %1348 = vmatpush1.msra.mxu0 0.0
    %1349 = vmatprep.subr.mxu0 0.0
    %1350 = vmatpush1.msra.mxu0 0.0
    %1351 = vmatprep.subr.mxu0 0.0
    %1352 = vmatpush1.msra.mxu0 0.0
    %1353 = vmatprep.mubr.f32.mxu0 0.0
    %1354 = vmatmul.mubr.f32.gmra.mrb[0].mxu0 %v1288
    %v1355 = vpop.f32.mrb[0].mxu0
    %v1356 = vadd.f32 0.0, %v1355
    %v1357 = vpop.f32.mrb[0].mxu0
    %v1358 = vadd.f32 0.0, %v1357
    %1359 = vdwg.mxu0
    %1360 = vmatprep.subr.mxu0 %v572
    %1361 = vmatpush1.msra.mxu0 %v571
    %1362 = vmatprep.subr.mxu0 %v576
    %1363 = vmatpush1.msra.mxu0 %v575
    %1364 = vmatprep.subr.mxu0 %v580
    %1365 = vmatpush1.msra.mxu0 %v579
    %1366 = vmatprep.subr.mxu0 %v584
    %1367 = vmatpush1.msra.mxu0 %v583
    %1368 = vmatprep.subr.mxu0 %v588
    %1369 = vmatpush1.msra.mxu0 %v587
    %1370 = vmatprep.subr.mxu0 %v592
    %1371 = vmatpush1.msra.mxu0 %v591
    %1372 = vmatprep.subr.mxu0 %v596
    %1373 = vmatpush1.msra.mxu0 %v595
    %1374 = vmatprep.subr.mxu0 %v600
    %1375 = vmatpush1.msra.mxu0 %v599
    %1376 = vmatprep.subr.mxu0 %v604
    %1377 = vmatpush1.msra.mxu0 %v603
    %1378 = vmatprep.subr.mxu0 %v608
    %1379 = vmatpush1.msra.mxu0 %v607
    %1380 = vmatprep.subr.mxu0 %v612
    %1381 = vmatpush1.msra.mxu0 %v611
    %1382 = vmatprep.subr.mxu0 %v616
    %1383 = vmatpush1.msra.mxu0 %v615
    %1384 = vmatprep.subr.mxu0 %v620
    %1385 = vmatpush1.msra.mxu0 %v619
    %1386 = vmatprep.subr.mxu0 %v624
    %1387 = vmatpush1.msra.mxu0 %v623
    %1388 = vmatprep.subr.mxu0 %v628
    %1389 = vmatpush1.msra.mxu0 %v627
    %1390 = vmatprep.subr.mxu0 %v632
    %1391 = vmatpush1.msra.mxu0 %v631
    %1392 = vmatprep.subr.mxu0 0.0
    %1393 = vmatpush1.msra.mxu0 0.0
    %1394 = vmatprep.subr.mxu0 0.0
    %1395 = vmatpush1.msra.mxu0 0.0
    %1396 = vmatprep.subr.mxu0 0.0
    %1397 = vmatpush1.msra.mxu0 0.0
    %1398 = vmatprep.subr.mxu0 0.0
    %1399 = vmatpush1.msra.mxu0 0.0
    %1400 = vmatprep.subr.mxu0 0.0
    %1401 = vmatpush1.msra.mxu0 0.0
    %1402 = vmatprep.subr.mxu0 0.0
    %1403 = vmatpush1.msra.mxu0 0.0
    %1404 = vmatprep.subr.mxu0 0.0
    %1405 = vmatpush1.msra.mxu0 0.0
    %1406 = vmatprep.subr.mxu0 0.0
    %1407 = vmatpush1.msra.mxu0 0.0
    %1408 = vmatprep.subr.mxu0 0.0
    %1409 = vmatpush1.msra.mxu0 0.0
    %1410 = vmatprep.subr.mxu0 0.0
    %1411 = vmatpush1.msra.mxu0 0.0
    %1412 = vmatprep.subr.mxu0 0.0
    %1413 = vmatpush1.msra.mxu0 0.0
    %1414 = vmatprep.subr.mxu0 0.0
    %1415 = vmatpush1.msra.mxu0 0.0
    %1416 = vmatprep.subr.mxu0 0.0
    %1417 = vmatpush1.msra.mxu0 0.0
    %1418 = vmatprep.subr.mxu0 0.0
    %1419 = vmatpush1.msra.mxu0 0.0
    %1420 = vmatprep.subr.mxu0 0.0
    %1421 = vmatpush1.msra.mxu0 0.0
    %1422 = vmatprep.subr.mxu0 0.0
    %1423 = vmatpush1.msra.mxu0 0.0
    %1424 = vmatprep.mubr.f32.mxu0 0.0
    %1425 = vmatmul.mubr.f32.gmra.mrb[0].mxu0 %v1288
    %v1426 = vpop.f32.mrb[0].mxu0
    %v1427 = vadd.f32 0.0, %v1426
    %v1428 = vpop.f32.mrb[0].mxu0
    %v1429 = vadd.f32 0.0, %v1428
    %1430 = vdwg.mxu0
    %v1431 = vadd.f32 %v434, %v1356
    %v1432 = vadd.f32 %v436, %v1358
    %v1433 = vadd.f32 %v547, %v1427
    %v1434 = vadd.f32 %v549, %v1429
    %v1435 = vmul.f32 %v1431, 0.5
    %v1436 = vtanh.pop %v1435
    %v1437 = vadd.f32 %v1436, 1.0
    %v1438 = vmul.f32 %v1437, 0.5
    %v1439 = vmul.f32 %v1432, 0.5
    %v1440 = vtanh.pop %v1439
    %v1441 = vadd.f32 %v1440, 1.0
    %v1442 = vmul.f32 %v1441, 0.5
    %v1443 = vtanh.pop %v1433
    %v1444 = vmul.f32 %v1434, 0.5
    %v1445 = vtanh.pop %v1444
    %v1446 = vadd.f32 %v1445, 1.0
    %v1447 = vmul.f32 %v1446, 0.5
    %v1448 = vmul.f32 %v1442, %v1286
    %v1449 = vmul.f32 %v1438, %v1443
    %v1450 = vadd.f32 %v1448, %v1449
    %v1451 = vtanh.pop %v1450
    %v1452 = vmul.f32 %v1447, %v1451
    %1453 = vmatprep.subr.mxu0 %v570
    %1454 = vmatpush1.msra.mxu0 %v569
    %1455 = vmatprep.subr.mxu0 %v574
    %1456 = vmatpush1.msra.mxu0 %v573
    %1457 = vmatprep.subr.mxu0 %v578
    %1458 = vmatpush1.msra.mxu0 %v577
    %1459 = vmatprep.subr.mxu0 %v582
    %1460 = vmatpush1.msra.mxu0 %v581
    %1461 = vmatprep.subr.mxu0 %v586
    %1462 = vmatpush1.msra.mxu0 %v585
    %1463 = vmatprep.subr.mxu0 %v590
    %1464 = vmatpush1.msra.mxu0 %v589
    %1465 = vmatprep.subr.mxu0 %v594
    %1466 = vmatpush1.msra.mxu0 %v593
    %1467 = vmatprep.subr.mxu0 %v598
    %1468 = vmatpush1.msra.mxu0 %v597
    %1469 = vmatprep.subr.mxu0 %v602
    %1470 = vmatpush1.msra.mxu0 %v601
    %1471 = vmatprep.subr.mxu0 %v606
    %1472 = vmatpush1.msra.mxu0 %v605
    %1473 = vmatprep.subr.mxu0 %v610
    %1474 = vmatpush1.msra.mxu0 %v609
    %1475 = vmatprep.subr.mxu0 %v614
    %1476 = vmatpush1.msra.mxu0 %v613
    %1477 = vmatprep.subr.mxu0 %v618
    %1478 = vmatpush1.msra.mxu0 %v617
    %1479 = vmatprep.subr.mxu0 %v622
    %1480 = vmatpush1.msra.mxu0 %v621
    %1481 = vmatprep.subr.mxu0 %v626
    %1482 = vmatpush1.msra.mxu0 %v625
    %1483 = vmatprep.subr.mxu0 %v630
    %1484 = vmatpush1.msra.mxu0 %v629
    %1485 = vmatprep.subr.mxu0 0.0
    %1486 = vmatpush1.msra.mxu0 0.0
    %1487 = vmatprep.subr.mxu0 0.0
    %1488 = vmatpush1.msra.mxu0 0.0
    %1489 = vmatprep.subr.mxu0 0.0
    %1490 = vmatpush1.msra.mxu0 0.0
    %1491 = vmatprep.subr.mxu0 0.0
    %1492 = vmatpush1.msra.mxu0 0.0
    %1493 = vmatprep.subr.mxu0 0.0
    %1494 = vmatpush1.msra.mxu0 0.0
    %1495 = vmatprep.subr.mxu0 0.0
    %1496 = vmatpush1.msra.mxu0 0.0
    %1497 = vmatprep.subr.mxu0 0.0
    %1498 = vmatpush1.msra.mxu0 0.0
    %1499 = vmatprep.subr.mxu0 0.0
    %1500 = vmatpush1.msra.mxu0 0.0
    %1501 = vmatprep.subr.mxu0 0.0
    %1502 = vmatpush1.msra.mxu0 0.0
    %1503 = vmatprep.subr.mxu0 0.0
    %1504 = vmatpush1.msra.mxu0 0.0
    %1505 = vmatprep.subr.mxu0 0.0
    %1506 = vmatpush1.msra.mxu0 0.0
    %1507 = vmatprep.subr.mxu0 0.0
    %1508 = vmatpush1.msra.mxu0 0.0
    %1509 = vmatprep.subr.mxu0 0.0
    %1510 = vmatpush1.msra.mxu0 0.0
    %1511 = vmatprep.subr.mxu0 0.0
    %1512 = vmatpush1.msra.mxu0 0.0
    %1513 = vmatprep.subr.mxu0 0.0
    %1514 = vmatpush1.msra.mxu0 0.0
    %1515 = vmatprep.subr.mxu0 0.0
    %1516 = vmatpush1.msra.mxu0 0.0
    %1517 = vmatprep.mubr.f32.mxu0 0.0
    %1518 = vmatmul.mubr.f32.gmra.mrb[0].mxu0 %v1452
    %v1519 = vpop.f32.mrb[0].mxu0
    %v1520 = vadd.f32 0.0, %v1519
    %v1521 = vpop.f32.mrb[0].mxu0
    %v1522 = vadd.f32 0.0, %v1521
    %1523 = vdwg.mxu0
    %1524 = vmatprep.subr.mxu0 %v572
    %1525 = vmatpush1.msra.mxu0 %v571
    %1526 = vmatprep.subr.mxu0 %v576
    %1527 = vmatpush1.msra.mxu0 %v575
    %1528 = vmatprep.subr.mxu0 %v580
    %1529 = vmatpush1.msra.mxu0 %v579
    %1530 = vmatprep.subr.mxu0 %v584
    %1531 = vmatpush1.msra.mxu0 %v583
    %1532 = vmatprep.subr.mxu0 %v588
    %1533 = vmatpush1.msra.mxu0 %v587
    %1534 = vmatprep.subr.mxu0 %v592
    %1535 = vmatpush1.msra.mxu0 %v591
    %1536 = vmatprep.subr.mxu0 %v596
    %1537 = vmatpush1.msra.mxu0 %v595
    %1538 = vmatprep.subr.mxu0 %v600
    %1539 = vmatpush1.msra.mxu0 %v599
    %1540 = vmatprep.subr.mxu0 %v604
    %1541 = vmatpush1.msra.mxu0 %v603
    %1542 = vmatprep.subr.mxu0 %v608
    %1543 = vmatpush1.msra.mxu0 %v607
    %1544 = vmatprep.subr.mxu0 %v612
    %1545 = vmatpush1.msra.mxu0 %v611
    %1546 = vmatprep.subr.mxu0 %v616
    %1547 = vmatpush1.msra.mxu0 %v615
    %1548 = vmatprep.subr.mxu0 %v620
    %1549 = vmatpush1.msra.mxu0 %v619
    %1550 = vmatprep.subr.mxu0 %v624
    %1551 = vmatpush1.msra.mxu0 %v623
    %1552 = vmatprep.subr.mxu0 %v628
    %1553 = vmatpush1.msra.mxu0 %v627
    %1554 = vmatprep.subr.mxu0 %v632
    %1555 = vmatpush1.msra.mxu0 %v631
    %1556 = vmatprep.subr.mxu0 0.0
    %1557 = vmatpush1.msra.mxu0 0.0
    %1558 = vmatprep.subr.mxu0 0.0
    %1559 = vmatpush1.msra.mxu0 0.0
    %1560 = vmatprep.subr.mxu0 0.0
    %1561 = vmatpush1.msra.mxu0 0.0
    %1562 = vmatprep.subr.mxu0 0.0
    %1563 = vmatpush1.msra.mxu0 0.0
    %1564 = vmatprep.subr.mxu0 0.0
    %1565 = vmatpush1.msra.mxu0 0.0
    %1566 = vmatprep.subr.mxu0 0.0
    %1567 = vmatpush1.msra.mxu0 0.0
    %1568 = vmatprep.subr.mxu0 0.0
    %1569 = vmatpush1.msra.mxu0 0.0
    %1570 = vmatprep.subr.mxu0 0.0
    %1571 = vmatpush1.msra.mxu0 0.0
    %1572 = vmatprep.subr.mxu0 0.0
    %1573 = vmatpush1.msra.mxu0 0.0
    %1574 = vmatprep.subr.mxu0 0.0
    %1575 = vmatpush1.msra.mxu0 0.0
    %1576 = vmatprep.subr.mxu0 0.0
    %1577 = vmatpush1.msra.mxu0 0.0
    %1578 = vmatprep.subr.mxu0 0.0
    %1579 = vmatpush1.msra.mxu0 0.0
    %1580 = vmatprep.subr.mxu0 0.0
    %1581 = vmatpush1.msra.mxu0 0.0
    %1582 = vmatprep.subr.mxu0 0.0
    %1583 = vmatpush1.msra.mxu0 0.0
    %1584 = vmatprep.subr.mxu0 0.0
    %1585 = vmatpush1.msra.mxu0 0.0
    %1586 = vmatprep.subr.mxu0 0.0
    %1587 = vmatpush1.msra.mxu0 0.0
    %1588 = vmatprep.mubr.f32.mxu0 0.0
    %1589 = vmatmul.mubr.f32.gmra.mrb[0].mxu0 %v1452
    %v1590 = vpop.f32.mrb[0].mxu0
    %v1591 = vadd.f32 0.0, %v1590
    %v1592 = vpop.f32.mrb[0].mxu0
    %v1593 = vadd.f32 0.0, %v1592
    %1594 = vdwg.mxu0
    %v1595 = vadd.f32 %v440, %v1520
    %v1596 = vadd.f32 %v442, %v1522
    %v1597 = vadd.f32 %v553, %v1591
    %v1598 = vadd.f32 %v555, %v1593
    %v1599 = vmul.f32 %v1595, 0.5
    %v1600 = vtanh.pop %v1599
    %v1601 = vadd.f32 %v1600, 1.0
    %v1602 = vmul.f32 %v1601, 0.5
    %v1603 = vmul.f32 %v1596, 0.5
    %v1604 = vtanh.pop %v1603
    %v1605 = vadd.f32 %v1604, 1.0
    %v1606 = vmul.f32 %v1605, 0.5
    %v1607 = vtanh.pop %v1597
    %v1608 = vmul.f32 %v1598, 0.5
    %v1609 = vtanh.pop %v1608
    %v1610 = vadd.f32 %v1609, 1.0
    %v1611 = vmul.f32 %v1610, 0.5
    %v1612 = vmul.f32 %v1606, %v1450
    %v1613 = vmul.f32 %v1602, %v1607
    %v1614 = vadd.f32 %v1612, %v1613
    %v1615 = vtanh.pop %v1614
    %v1616 = vmul.f32 %v1611, %v1615
    %1617 = vmatprep.subr.mxu0 %v570
    %1618 = vmatpush1.msra.mxu0 %v569
    %1619 = vmatprep.subr.mxu0 %v574
    %1620 = vmatpush1.msra.mxu0 %v573
    %1621 = vmatprep.subr.mxu0 %v578
    %1622 = vmatpush1.msra.mxu0 %v577
    %1623 = vmatprep.subr.mxu0 %v582
    %1624 = vmatpush1.msra.mxu0 %v581
    %1625 = vmatprep.subr.mxu0 %v586
    %1626 = vmatpush1.msra.mxu0 %v585
    %1627 = vmatprep.subr.mxu0 %v590
    %1628 = vmatpush1.msra.mxu0 %v589
    %1629 = vmatprep.subr.mxu0 %v594
    %1630 = vmatpush1.msra.mxu0 %v593
    %1631 = vmatprep.subr.mxu0 %v598
    %1632 = vmatpush1.msra.mxu0 %v597
    %1633 = vmatprep.subr.mxu0 %v602
    %1634 = vmatpush1.msra.mxu0 %v601
    %1635 = vmatprep.subr.mxu0 %v606
    %1636 = vmatpush1.msra.mxu0 %v605
    %1637 = vmatprep.subr.mxu0 %v610
    %1638 = vmatpush1.msra.mxu0 %v609
    %1639 = vmatprep.subr.mxu0 %v614
    %1640 = vmatpush1.msra.mxu0 %v613
    %1641 = vmatprep.subr.mxu0 %v618
    %1642 = vmatpush1.msra.mxu0 %v617
    %1643 = vmatprep.subr.mxu0 %v622
    %1644 = vmatpush1.msra.mxu0 %v621
    %1645 = vmatprep.subr.mxu0 %v626
    %1646 = vmatpush1.msra.mxu0 %v625
    %1647 = vmatprep.subr.mxu0 %v630
    %1648 = vmatpush1.msra.mxu0 %v629
    %1649 = vmatprep.subr.mxu0 0.0
    %1650 = vmatpush1.msra.mxu0 0.0
    %1651 = vmatprep.subr.mxu0 0.0
    %1652 = vmatpush1.msra.mxu0 0.0
    %1653 = vmatprep.subr.mxu0 0.0
    %1654 = vmatpush1.msra.mxu0 0.0
    %1655 = vmatprep.subr.mxu0 0.0
    %1656 = vmatpush1.msra.mxu0 0.0
    %1657 = vmatprep.subr.mxu0 0.0
    %1658 = vmatpush1.msra.mxu0 0.0
    %1659 = vmatprep.subr.mxu0 0.0
    %1660 = vmatpush1.msra.mxu0 0.0
    %1661 = vmatprep.subr.mxu0 0.0
    %1662 = vmatpush1.msra.mxu0 0.0
    %1663 = vmatprep.subr.mxu0 0.0
    %1664 = vmatpush1.msra.mxu0 0.0
    %1665 = vmatprep.subr.mxu0 0.0
    %1666 = vmatpush1.msra.mxu0 0.0
    %1667 = vmatprep.subr.mxu0 0.0
    %1668 = vmatpush1.msra.mxu0 0.0
    %1669 = vmatprep.subr.mxu0 0.0
    %1670 = vmatpush1.msra.mxu0 0.0
    %1671 = vmatprep.subr.mxu0 0.0
    %1672 = vmatpush1.msra.mxu0 0.0
    %1673 = vmatprep.subr.mxu0 0.0
    %1674 = vmatpush1.msra.mxu0 0.0
    %1675 = vmatprep.subr.mxu0 0.0
    %1676 = vmatpush1.msra.mxu0 0.0
    %1677 = vmatprep.subr.mxu0 0.0
    %1678 = vmatpush1.msra.mxu0 0.0
    %1679 = vmatprep.subr.mxu0 0.0
    %1680 = vmatpush1.msra.mxu0 0.0
    %1681 = vmatprep.mubr.f32.mxu0 0.0
    %1682 = vmatmul.mubr.f32.gmra.mrb[0].mxu0 %v1616
    %v1683 = vpop.f32.mrb[0].mxu0
    %v1684 = vadd.f32 0.0, %v1683
    %v1685 = vpop.f32.mrb[0].mxu0
    %v1686 = vadd.f32 0.0, %v1685
    %1687 = vdwg.mxu0
    %1688 = vmatprep.subr.mxu0 %v572
    %1689 = vmatpush1.msra.mxu0 %v571
    %1690 = vmatprep.subr.mxu0 %v576
    %1691 = vmatpush1.msra.mxu0 %v575
    %1692 = vmatprep.subr.mxu0 %v580
    %1693 = vmatpush1.msra.mxu0 %v579
    %1694 = vmatprep.subr.mxu0 %v584
    %1695 = vmatpush1.msra.mxu0 %v583
    %1696 = vmatprep.subr.mxu0 %v588
    %1697 = vmatpush1.msra.mxu0 %v587
    %1698 = vmatprep.subr.mxu0 %v592
    %1699 = vmatpush1.msra.mxu0 %v591
    %1700 = vmatprep.subr.mxu0 %v596
    %1701 = vmatpush1.msra.mxu0 %v595
    %1702 = vmatprep.subr.mxu0 %v600
    %1703 = vmatpush1.msra.mxu0 %v599
    %1704 = vmatprep.subr.mxu0 %v604
    %1705 = vmatpush1.msra.mxu0 %v603
    %1706 = vmatprep.subr.mxu0 %v608
    %1707 = vmatpush1.msra.mxu0 %v607
    %1708 = vmatprep.subr.mxu0 %v612
    %1709 = vmatpush1.msra.mxu0 %v611
    %1710 = vmatprep.subr.mxu0 %v616
    %1711 = vmatpush1.msra.mxu0 %v615
    %1712 = vmatprep.subr.mxu0 %v620
    %1713 = vmatpush1.msra.mxu0 %v619
    %1714 = vmatprep.subr.mxu0 %v624
    %1715 = vmatpush1.msra.mxu0 %v623
    %1716 = vmatprep.subr.mxu0 %v628
    %1717 = vmatpush1.msra.mxu0 %v627
    %1718 = vmatprep.subr.mxu0 %v632
    %1719 = vmatpush1.msra.mxu0 %v631
    %1720 = vmatprep.subr.mxu0 0.0
    %1721 = vmatpush1.msra.mxu0 0.0
    %1722 = vmatprep.subr.mxu0 0.0
    %1723 = vmatpush1.msra.mxu0 0.0
    %1724 = vmatprep.subr.mxu0 0.0
    %1725 = vmatpush1.msra.mxu0 0.0
    %1726 = vmatprep.subr.mxu0 0.0
    %1727 = vmatpush1.msra.mxu0 0.0
    %1728 = vmatprep.subr.mxu0 0.0
    %1729 = vmatpush1.msra.mxu0 0.0
    %1730 = vmatprep.subr.mxu0 0.0
    %1731 = vmatpush1.msra.mxu0 0.0
    %1732 = vmatprep.subr.mxu0 0.0
    %1733 = vmatpush1.msra.mxu0 0.0
    %1734 = vmatprep.subr.mxu0 0.0
    %1735 = vmatpush1.msra.mxu0 0.0
    %1736 = vmatprep.subr.mxu0 0.0
    %1737 = vmatpush1.msra.mxu0 0.0
    %1738 = vmatprep.subr.mxu0 0.0
    %1739 = vmatpush1.msra.mxu0 0.0
    %1740 = vmatprep.subr.mxu0 0.0
    %1741 = vmatpush1.msra.mxu0 0.0
    %1742 = vmatprep.subr.mxu0 0.0
    %1743 = vmatpush1.msra.mxu0 0.0
    %1744 = vmatprep.subr.mxu0 0.0
    %1745 = vmatpush1.msra.mxu0 0.0
    %1746 = vmatprep.subr.mxu0 0.0
    %1747 = vmatpush1.msra.mxu0 0.0
    %1748 = vmatprep.subr.mxu0 0.0
    %1749 = vmatpush1.msra.mxu0 0.0
    %1750 = vmatprep.subr.mxu0 0.0
    %1751 = vmatpush1.msra.mxu0 0.0
    %1752 = vmatprep.mubr.f32.mxu0 0.0
    %1753 = vmatmul.mubr.f32.gmra.mrb[0].mxu0 %v1616
    %v1754 = vpop.f32.mrb[0].mxu0
    %v1755 = vadd.f32 0.0, %v1754
    %v1756 = vpop.f32.mrb[0].mxu0
    %v1757 = vadd.f32 0.0, %v1756
    %1758 = vdwg.mxu0
    %v1759 = vadd.f32 %v446, %v1684
    %v1760 = vadd.f32 %v448, %v1686
    %v1761 = vadd.f32 %v559, %v1755
    %v1762 = vadd.f32 %v561, %v1757
    %v1763 = vmul.f32 %v1759, 0.5
    %v1764 = vtanh.pop %v1763
    %v1765 = vadd.f32 %v1764, 1.0
    %v1766 = vmul.f32 %v1765, 0.5
    %v1767 = vmul.f32 %v1760, 0.5
    %v1768 = vtanh.pop %v1767
    %v1769 = vadd.f32 %v1768, 1.0
    %v1770 = vmul.f32 %v1769, 0.5
    %v1771 = vtanh.pop %v1761
    %v1772 = vmul.f32 %v1762, 0.5
    %v1773 = vtanh.pop %v1772
    %v1774 = vadd.f32 %v1773, 1.0
    %v1775 = vmul.f32 %v1774, 0.5
    %v1776 = vmul.f32 %v1770, %v1614
    %v1777 = vmul.f32 %v1766, %v1771
    %v1778 = vadd.f32 %v1776, %v1777
    %v1779 = vtanh.pop %v1778
    %v1780 = vmul.f32 %v1775, %v1779
    %1781 = vmatprep.subr.mxu0 %v570
    %1782 = vmatpush1.msra.mxu0 %v569
    %1783 = vmatprep.subr.mxu0 %v574
    %1784 = vmatpush1.msra.mxu0 %v573
    %1785 = vmatprep.subr.mxu0 %v578
    %1786 = vmatpush1.msra.mxu0 %v577
    %1787 = vmatprep.subr.mxu0 %v582
    %1788 = vmatpush1.msra.mxu0 %v581
    %1789 = vmatprep.subr.mxu0 %v586
    %1790 = vmatpush1.msra.mxu0 %v585
    %1791 = vmatprep.subr.mxu0 %v590
    %1792 = vmatpush1.msra.mxu0 %v589
    %1793 = vmatprep.subr.mxu0 %v594
    %1794 = vmatpush1.msra.mxu0 %v593
    %1795 = vmatprep.subr.mxu0 %v598
    %1796 = vmatpush1.msra.mxu0 %v597
    %1797 = vmatprep.subr.mxu0 %v602
    %1798 = vmatpush1.msra.mxu0 %v601
    %1799 = vmatprep.subr.mxu0 %v606
    %1800 = vmatpush1.msra.mxu0 %v605
    %1801 = vmatprep.subr.mxu0 %v610
    %1802 = vmatpush1.msra.mxu0 %v609
    %1803 = vmatprep.subr.mxu0 %v614
    %1804 = vmatpush1.msra.mxu0 %v613
    %1805 = vmatprep.subr.mxu0 %v618
    %1806 = vmatpush1.msra.mxu0 %v617
    %1807 = vmatprep.subr.mxu0 %v622
    %1808 = vmatpush1.msra.mxu0 %v621
    %1809 = vmatprep.subr.mxu0 %v626
    %1810 = vmatpush1.msra.mxu0 %v625
    %1811 = vmatprep.subr.mxu0 %v630
    %1812 = vmatpush1.msra.mxu0 %v629
    %1813 = vmatprep.subr.mxu0 0.0
    %1814 = vmatpush1.msra.mxu0 0.0
    %1815 = vmatprep.subr.mxu0 0.0
    %1816 = vmatpush1.msra.mxu0 0.0
    %1817 = vmatprep.subr.mxu0 0.0
    %1818 = vmatpush1.msra.mxu0 0.0
    %1819 = vmatprep.subr.mxu0 0.0
    %1820 = vmatpush1.msra.mxu0 0.0
    %1821 = vmatprep.subr.mxu0 0.0
    %1822 = vmatpush1.msra.mxu0 0.0
    %1823 = vmatprep.subr.mxu0 0.0
    %1824 = vmatpush1.msra.mxu0 0.0
    %1825 = vmatprep.subr.mxu0 0.0
    %1826 = vmatpush1.msra.mxu0 0.0
    %1827 = vmatprep.subr.mxu0 0.0
    %1828 = vmatpush1.msra.mxu0 0.0
    %1829 = vmatprep.subr.mxu0 0.0
    %1830 = vmatpush1.msra.mxu0 0.0
    %1831 = vmatprep.subr.mxu0 0.0
    %1832 = vmatpush1.msra.mxu0 0.0
    %1833 = vmatprep.subr.mxu0 0.0
    %1834 = vmatpush1.msra.mxu0 0.0
    %1835 = vmatprep.subr.mxu0 0.0
    %1836 = vmatpush1.msra.mxu0 0.0
    %1837 = vmatprep.subr.mxu0 0.0
    %1838 = vmatpush1.msra.mxu0 0.0
    %1839 = vmatprep.subr.mxu0 0.0
    %1840 = vmatpush1.msra.mxu0 0.0
    %1841 = vmatprep.subr.mxu0 0.0
    %1842 = vmatpush1.msra.mxu0 0.0
    %1843 = vmatprep.subr.mxu0 0.0
    %1844 = vmatpush1.msra.mxu0 0.0
    %1845 = vmatprep.mubr.f32.mxu0 0.0
    %1846 = vmatmul.mubr.f32.gmra.mrb[0].mxu0 %v1780
    %v1847 = vpop.f32.mrb[0].mxu0
    %v1848 = vadd.f32 0.0, %v1847
    %v1849 = vpop.f32.mrb[0].mxu0
    %v1850 = vadd.f32 0.0, %v1849
    %1851 = vdwg.mxu0
    %1852 = vmatprep.subr.mxu0 %v572
    %1853 = vmatpush1.msra.mxu0 %v571
    %1854 = vmatprep.subr.mxu0 %v576
    %1855 = vmatpush1.msra.mxu0 %v575
    %1856 = vmatprep.subr.mxu0 %v580
    %1857 = vmatpush1.msra.mxu0 %v579
    %1858 = vmatprep.subr.mxu0 %v584
    %1859 = vmatpush1.msra.mxu0 %v583
    %1860 = vmatprep.subr.mxu0 %v588
    %1861 = vmatpush1.msra.mxu0 %v587
    %1862 = vmatprep.subr.mxu0 %v592
    %1863 = vmatpush1.msra.mxu0 %v591
    %1864 = vmatprep.subr.mxu0 %v596
    %1865 = vmatpush1.msra.mxu0 %v595
    %1866 = vmatprep.subr.mxu0 %v600
    %1867 = vmatpush1.msra.mxu0 %v599
    %1868 = vmatprep.subr.mxu0 %v604
    %1869 = vmatpush1.msra.mxu0 %v603
    %1870 = vmatprep.subr.mxu0 %v608
    %1871 = vmatpush1.msra.mxu0 %v607
    %1872 = vmatprep.subr.mxu0 %v612
    %1873 = vmatpush1.msra.mxu0 %v611
    %1874 = vmatprep.subr.mxu0 %v616
    %1875 = vmatpush1.msra.mxu0 %v615
    %1876 = vmatprep.subr.mxu0 %v620
    %1877 = vmatpush1.msra.mxu0 %v619
    %1878 = vmatprep.subr.mxu0 %v624
    %1879 = vmatpush1.msra.mxu0 %v623
    %1880 = vmatprep.subr.mxu0 %v628
    %1881 = vmatpush1.msra.mxu0 %v627
    %1882 = vmatprep.subr.mxu0 %v632
    %1883 = vmatpush1.msra.mxu0 %v631
    %1884 = vmatprep.subr.mxu0 0.0
    %1885 = vmatpush1.msra.mxu0 0.0
    %1886 = vmatprep.subr.mxu0 0.0
    %1887 = vmatpush1.msra.mxu0 0.0
    %1888 = vmatprep.subr.mxu0 0.0
    %1889 = vmatpush1.msra.mxu0 0.0
    %1890 = vmatprep.subr.mxu0 0.0
    %1891 = vmatpush1.msra.mxu0 0.0
    %1892 = vmatprep.subr.mxu0 0.0
    %1893 = vmatpush1.msra.mxu0 0.0
    %1894 = vmatprep.subr.mxu0 0.0
    %1895 = vmatpush1.msra.mxu0 0.0
    %1896 = vmatprep.subr.mxu0 0.0
    %1897 = vmatpush1.msra.mxu0 0.0
    %1898 = vmatprep.subr.mxu0 0.0
    %1899 = vmatpush1.msra.mxu0 0.0
    %1900 = vmatprep.subr.mxu0 0.0
    %1901 = vmatpush1.msra.mxu0 0.0
    %1902 = vmatprep.subr.mxu0 0.0
    %1903 = vmatpush1.msra.mxu0 0.0
    %1904 = vmatprep.subr.mxu0 0.0
    %1905 = vmatpush1.msra.mxu0 0.0
    %1906 = vmatprep.subr.mxu0 0.0
    %1907 = vmatpush1.msra.mxu0 0.0
    %1908 = vmatprep.subr.mxu0 0.0
    %1909 = vmatpush1.msra.mxu0 0.0
    %1910 = vmatprep.subr.mxu0 0.0
    %1911 = vmatpush1.msra.mxu0 0.0
    %1912 = vmatprep.subr.mxu0 0.0
    %1913 = vmatpush1.msra.mxu0 0.0
    %1914 = vmatprep.subr.mxu0 0.0
    %1915 = vmatpush1.msra.mxu0 0.0
    %1916 = vmatprep.mubr.f32.mxu0 0.0
    %1917 = vmatmul.mubr.f32.gmra.mrb[0].mxu0 %v1780
    %v1918 = vpop.f32.mrb[0].mxu0
    %v1919 = vadd.f32 0.0, %v1918
    %v1920 = vpop.f32.mrb[0].mxu0
    %v1921 = vadd.f32 0.0, %v1920
    %1922 = vdwg.mxu0
    %v1923 = vadd.f32 %v452, %v1848
    %v1924 = vadd.f32 %v454, %v1850
    %v1925 = vadd.f32 %v565, %v1919
    %v1926 = vadd.f32 %v567, %v1921
    %v1927 = vmul.f32 %v1923, 0.5
    %v1928 = vtanh.pop %v1927
    %v1929 = vadd.f32 %v1928, 1.0
    %v1930 = vmul.f32 %v1929, 0.5
    %v1931 = vmul.f32 %v1924, 0.5
    %v1932 = vtanh.pop %v1931
    %v1933 = vadd.f32 %v1932, 1.0
    %v1934 = vmul.f32 %v1933, 0.5
    %v1935 = vtanh.pop %v1925
    %v1936 = vmul.f32 %v1926, 0.5
    %v1937 = vtanh.pop %v1936
    %v1938 = vadd.f32 %v1937, 1.0
    %v1939 = vmul.f32 %v1938, 0.5
    %v1940 = vmul.f32 %v1934, %v1778
    %v1941 = vmul.f32 %v1930, %v1935
    %v1942 = vadd.f32 %v1940, %v1941
    %v1943 = vtanh.pop %v1942
    %v1944 = vmul.f32 %v1939, %v1943
    %v1945 = vld [vmem:[#allocation5] sm:$0xff]
    %v1946 = vld [vmem:[#allocation5 + $0x8] sm:$0xff]
    %v1947 = vld [vmem:[#allocation5 + $0x10] sm:$0xff]
    %v1948 = vld [vmem:[#allocation5 + $0x18] sm:$0xff]
    %v1949 = vld [vmem:[#allocation5 + $0x20] sm:$0xff]
    %v1950 = vld [vmem:[#allocation5 + $0x28] sm:$0xff]
    %v1951 = vld [vmem:[#allocation5 + $0x30] sm:$0xff]
    %v1952 = vld [vmem:[#allocation5 + $0x38] sm:$0xff]
    %v1953 = vld [vmem:[#allocation5 + $0x40] sm:$0xff]
    %v1954 = vld [vmem:[#allocation5 + $0x48] sm:$0xff]
    %v1955 = vld [vmem:[#allocation5 + $0x50] sm:$0xff]
    %v1956 = vld [vmem:[#allocation5 + $0x58] sm:$0xff]
    %v1957 = vld [vmem:[#allocation5 + $0x60] sm:$0xff]
    %v1958 = vld [vmem:[#allocation5 + $0x68] sm:$0xff]
    %v1959 = vld [vmem:[#allocation5 + $0x70] sm:$0xff]
    %v1960 = vld [vmem:[#allocation5 + $0x78] sm:$0xff]
    %v1961 = vld [vmem:[#allocation5 + $0x80] sm:$0xff]
    %v1962 = vld [vmem:[#allocation5 + $0x88] sm:$0xff]
    %v1963 = vld [vmem:[#allocation5 + $0x90] sm:$0xff]
    %v1964 = vld [vmem:[#allocation5 + $0x98] sm:$0xff]
    %v1965 = vld [vmem:[#allocation5 + $0xa0] sm:$0xff]
    %v1966 = vld [vmem:[#allocation5 + $0xa8] sm:$0xff]
    %v1967 = vld [vmem:[#allocation5 + $0xb0] sm:$0xff]
    %v1968 = vld [vmem:[#allocation5 + $0xb8] sm:$0xff]
    %v1969 = vld [vmem:[#allocation5 + $0xc0] sm:$0xff]
    %v1970 = vld [vmem:[#allocation5 + $0xc8] sm:$0xff]
    %v1971 = vld [vmem:[#allocation5 + $0xd0] sm:$0xff]
    %v1972 = vld [vmem:[#allocation5 + $0xd8] sm:$0xff]
    %v1973 = vld [vmem:[#allocation5 + $0xe0] sm:$0xff]
    %v1974 = vld [vmem:[#allocation5 + $0xe8] sm:$0xff]
    %v1975 = vld [vmem:[#allocation5 + $0xf0] sm:$0xff]
    %v1976 = vld [vmem:[#allocation5 + $0xf8] sm:$0xff]
    %v1977 = vld [vmem:[%s7] sm:$0x3]
    %v1979 = vrot.slane %v960, 7
    %v1982 = vrot.slane %v1124, 6
    %v1985 = vrot.slane %v1288, 5
    %v1988 = vrot.slane %v1452, 4
    %v1991 = vrot.slane %v1616, 3
    %v1994 = vrot.slane %v1780, 2
    %v1997 = vrot.slane %v1944, 1
    %vm1999 = vcmask 1040384
    %v2000 = vsel %vm1999, %v796, %v1979
    %vm2001 = vcmask 1041408
    %v2002 = vsel %vm2001, %v2000, %v1982
    %vm2003 = vcmask 1042432
    %v2004 = vsel %vm2003, %v2002, %v1985
    %vm2005 = vcmask 1043456
    %v2006 = vsel %vm2005, %v2004, %v1988
    %vm2007 = vcmask 1044480
    %v2008 = vsel %vm2007, %v2006, %v1991
    %vm2009 = vcmask 1045504
    %v2010 = vsel %vm2009, %v2008, %v1994
    %vm2011 = vcmask 1046528
    %v2012 = vsel %vm2011, %v2010, %v1997
    %v2014 = vlaneseq
    %v2015 = vshrl.u32 %v2014, 7
    %v2016 = vsub.s32 0, %v2015
    %v2017 = vrot.slane %v1977, %v2016
    %v2018 = vlaneseq
    %v2019 = vshrl.u32 %v2018, 7
    %v2020 = vsub.s32 1, %v2019
    %v2021 = vrot.slane %v1977, %v2020
    %2024 = vmatprep.subr.mxu0 %v1946
    %2025 = vmatpush1.msra.mxu0 %v1945
    %2026 = vmatprep.subr.mxu0 %v1948
    %2027 = vmatpush1.msra.mxu0 %v1947
    %2028 = vmatprep.subr.mxu0 %v1950
    %2029 = vmatpush1.msra.mxu0 %v1949
    %2030 = vmatprep.subr.mxu0 %v1952
    %2031 = vmatpush1.msra.mxu0 %v1951
    %2032 = vmatprep.subr.mxu0 %v1954
    %2033 = vmatpush1.msra.mxu0 %v1953
    %2034 = vmatprep.subr.mxu0 %v1956
    %2035 = vmatpush1.msra.mxu0 %v1955
    %2036 = vmatprep.subr.mxu0 %v1958
    %2037 = vmatpush1.msra.mxu0 %v1957
    %2038 = vmatprep.subr.mxu0 %v1960
    %2039 = vmatpush1.msra.mxu0 %v1959
    %2040 = vmatprep.subr.mxu0 %v1962
    %2041 = vmatpush1.msra.mxu0 %v1961
    %2042 = vmatprep.subr.mxu0 %v1964
    %2043 = vmatpush1.msra.mxu0 %v1963
    %2044 = vmatprep.subr.mxu0 %v1966
    %2045 = vmatpush1.msra.mxu0 %v1965
    %2046 = vmatprep.subr.mxu0 %v1968
    %2047 = vmatpush1.msra.mxu0 %v1967
    %2048 = vmatprep.subr.mxu0 %v1970
    %2049 = vmatpush1.msra.mxu0 %v1969
    %2050 = vmatprep.subr.mxu0 %v1972
    %2051 = vmatpush1.msra.mxu0 %v1971
    %2052 = vmatprep.subr.mxu0 %v1974
    %2053 = vmatpush1.msra.mxu0 %v1973
    %2054 = vmatprep.subr.mxu0 %v1976
    %2055 = vmatpush1.msra.mxu0 %v1975
    %2056 = vmatprep.subr.mxu0 0.0
    %2057 = vmatpush1.msra.mxu0 0.0
    %2058 = vmatprep.subr.mxu0 0.0
    %2059 = vmatpush1.msra.mxu0 0.0
    %2060 = vmatprep.subr.mxu0 0.0
    %2061 = vmatpush1.msra.mxu0 0.0
    %2062 = vmatprep.subr.mxu0 0.0
    %2063 = vmatpush1.msra.mxu0 0.0
    %2064 = vmatprep.subr.mxu0 0.0
    %2065 = vmatpush1.msra.mxu0 0.0
    %2066 = vmatprep.subr.mxu0 0.0
    %2067 = vmatpush1.msra.mxu0 0.0
    %2068 = vmatprep.subr.mxu0 0.0
    %2069 = vmatpush1.msra.mxu0 0.0
    %2070 = vmatprep.subr.mxu0 0.0
    %2071 = vmatpush1.msra.mxu0 0.0
    %2072 = vmatprep.subr.mxu0 0.0
    %2073 = vmatpush1.msra.mxu0 0.0
    %2074 = vmatprep.subr.mxu0 0.0
    %2075 = vmatpush1.msra.mxu0 0.0
    %2076 = vmatprep.subr.mxu0 0.0
    %2077 = vmatpush1.msra.mxu0 0.0
    %2078 = vmatprep.subr.mxu0 0.0
    %2079 = vmatpush1.msra.mxu0 0.0
    %2080 = vmatprep.subr.mxu0 0.0
    %2081 = vmatpush1.msra.mxu0 0.0
    %2082 = vmatprep.subr.mxu0 0.0
    %2083 = vmatpush1.msra.mxu0 0.0
    %2084 = vmatprep.subr.mxu0 0.0
    %2085 = vmatpush1.msra.mxu0 0.0
    %2086 = vmatprep.subr.mxu0 0.0
    %2087 = vmatpush1.msra.mxu0 0.0
    %2088 = vmatprep.mubr.f32.mxu0 0.0
    %2089 = vmatmul.mubr.f32.gmra.mrb[0].mxu0 %v2012
    %v2090 = vpop.f32.mrb[0].mxu0
    %v2091 = vadd.f32 %v2017, %v2090
    %v2092 = vpop.f32.mrb[0].mxu0
    %v2093 = vadd.f32 %v2021, %v2092
    %2094 = vdwg.mxu0
    %2095 = vst [vmem:[#allocation7] sm:$0xff] %v2091
    %2096 = vst [vmem:[#allocation7 + $0x8] sm:$0xff] %v2093
    %v2098 = vrot.slane %v796, 1
    %v2100 = vrot.slane %v1124, 7
    %v2102 = vrot.slane %v1288, 6
    %v2104 = vrot.slane %v1452, 5
    %v2106 = vrot.slane %v1616, 4
    %v2108 = vrot.slane %v1780, 3
    %v2110 = vrot.slane %v1944, 2
    %v2112 = vsel %vm1999, %v2098, %v960
    %v2113 = vsel %vm2001, %v2112, %v2100
    %v2114 = vsel %vm2003, %v2113, %v2102
    %v2115 = vsel %vm2005, %v2114, %v2104
    %v2116 = vsel %vm2007, %v2115, %v2106
    %v2117 = vsel %vm2009, %v2116, %v2108
    %v2118 = vsel %vm2011, %v2117, %v2110
    %2119 = vmatprep.subr.mxu0 %v1946
    %2120 = vmatpush1.msra.mxu0 %v1945
    %2121 = vmatprep.subr.mxu0 %v1948
    %2122 = vmatpush1.msra.mxu0 %v1947
    %2123 = vmatprep.subr.mxu0 %v1950
    %2124 = vmatpush1.msra.mxu0 %v1949
    %2125 = vmatprep.subr.mxu0 %v1952
    %2126 = vmatpush1.msra.mxu0 %v1951
    %2127 = vmatprep.subr.mxu0 %v1954
    %2128 = vmatpush1.msra.mxu0 %v1953
    %2129 = vmatprep.subr.mxu0 %v1956
    %2130 = vmatpush1.msra.mxu0 %v1955
    %2131 = vmatprep.subr.mxu0 %v1958
    %2132 = vmatpush1.msra.mxu0 %v1957
    %2133 = vmatprep.subr.mxu0 %v1960
    %2134 = vmatpush1.msra.mxu0 %v1959
    %2135 = vmatprep.subr.mxu0 %v1962
    %2136 = vmatpush1.msra.mxu0 %v1961
    %2137 = vmatprep.subr.mxu0 %v1964
    %2138 = vmatpush1.msra.mxu0 %v1963
    %2139 = vmatprep.subr.mxu0 %v1966
    %2140 = vmatpush1.msra.mxu0 %v1965
    %2141 = vmatprep.subr.mxu0 %v1968
    %2142 = vmatpush1.msra.mxu0 %v1967
    %2143 = vmatprep.subr.mxu0 %v1970
    %2144 = vmatpush1.msra.mxu0 %v1969
    %2145 = vmatprep.subr.mxu0 %v1972
    %2146 = vmatpush1.msra.mxu0 %v1971
    %2147 = vmatprep.subr.mxu0 %v1974
    %2148 = vmatpush1.msra.mxu0 %v1973
    %2149 = vmatprep.subr.mxu0 %v1976
    %2150 = vmatpush1.msra.mxu0 %v1975
    %2151 = vmatprep.subr.mxu0 0.0
    %2152 = vmatpush1.msra.mxu0 0.0
    %2153 = vmatprep.subr.mxu0 0.0
    %2154 = vmatpush1.msra.mxu0 0.0
    %2155 = vmatprep.subr.mxu0 0.0
    %2156 = vmatpush1.msra.mxu0 0.0
    %2157 = vmatprep.subr.mxu0 0.0
    %2158 = vmatpush1.msra.mxu0 0.0
    %2159 = vmatprep.subr.mxu0 0.0
    %2160 = vmatpush1.msra.mxu0 0.0
    %2161 = vmatprep.subr.mxu0 0.0
    %2162 = vmatpush1.msra.mxu0 0.0
    %2163 = vmatprep.subr.mxu0 0.0
    %2164 = vmatpush1.msra.mxu0 0.0
    %2165 = vmatprep.subr.mxu0 0.0
    %2166 = vmatpush1.msra.mxu0 0.0
    %2167 = vmatprep.subr.mxu0 0.0
    %2168 = vmatpush1.msra.mxu0 0.0
    %2169 = vmatprep.subr.mxu0 0.0
    %2170 = vmatpush1.msra.mxu0 0.0
    %2171 = vmatprep.subr.mxu0 0.0
    %2172 = vmatpush1.msra.mxu0 0.0
    %2173 = vmatprep.subr.mxu0 0.0
    %2174 = vmatpush1.msra.mxu0 0.0
    %2175 = vmatprep.subr.mxu0 0.0
    %2176 = vmatpush1.msra.mxu0 0.0
    %2177 = vmatprep.subr.mxu0 0.0
    %2178 = vmatpush1.msra.mxu0 0.0
    %2179 = vmatprep.subr.mxu0 0.0
    %2180 = vmatpush1.msra.mxu0 0.0
    %2181 = vmatprep.subr.mxu0 0.0
    %2182 = vmatpush1.msra.mxu0 0.0
    %2183 = vmatprep.mubr.f32.mxu0 0.0
    %2184 = vmatmul.mubr.f32.gmra.mrb[0].mxu0 %v2118
    %v2185 = vpop.f32.mrb[0].mxu0
    %v2186 = vadd.f32 %v2017, %v2185
    %v2187 = vpop.f32.mrb[0].mxu0
    %v2188 = vadd.f32 %v2021, %v2187
    %2189 = vdwg.mxu0
    %s2190 = scalar_lea.vmem [#allocation7], 16
    %2191 = vst [vmem:[%s2190] sm:$0xff] %v2186
    %2192 = vst [vmem:[%s2190 + $0x8] sm:$0xff] %v2188
    // Predicated region
    $region42: #{decoder_forward.1} parent=1 // pred_check
      _
    $region43: #{decoder_forward.1} parent=1 // pred_check_branch
      %2194 = sbr.rel (0) target = $region45
    $region44: #{decoder_forward.1} parent=1 // pred_region
      %s2196 = ssub.s32 512, 512
      %2197 = vsyncadd [#allocation4], %s2196
      %s2198 = sshll.u32 [#allocation7], 4
      %s2199 = int_to_ptr.vmem [resolvable:$true] %s2198
      %2204 = dma.vmem_to_hbm [thread:$0]  %s2199, 512, %s8, [#allocation4], 256, 256, 16
    $region45: #{decoder_forward.1} parent=1 // pred_fallthru
      _
    // Predicated region
    $region46: #{decoder_forward.1} parent=1 // pred_check
      _
    $region47: #{decoder_forward.1} parent=1 // pred_check_branch
      %2206 = sbr.rel (0) target = $region49
    $region48: #{decoder_forward.1} parent=1 // pred_region
      %2207 = dma.done [#allocation4], 512
    $region49: #{decoder_forward.1} parent=1 // pred_fallthru
      _
    %2208 = vsyncpa [#allocation3], 1
    %2209 = vsyncpa [#allocation6], 1
    %2210 = vsyncpa [#allocation4], 1

</llo_original>
